<compile_context>
chip_gen: v7x
topology: tpu7x:2x2x1
jax: 0.10.0
libtpu: 0.0.40
codegen_flags: <defaults>
</compile_context>

<pallas_src>
import jax
import jax.numpy as jnp
from jax.experimental import pallas as pl
from jax.experimental.pallas import tpu as pltpu


def _round_up(v, m):
    return ((v + m - 1) // m) * m


def _gru_recurrent_kernel(xproj_ref, uzr_ref, uh_ref, h_out_ref, h_scratch):
    """One grid step = T_BLOCK GRU time steps.

    xproj_ref : (T_BLOCK, Bp, 3*Hp)  precomputed x_t @ [Wz|Wr|Wh] + [bz|br|bh]
    uzr_ref   : (Hp, 2*Hp)           fused recurrent weights [Uz | Ur]
    uh_ref    : (Hp, Hp)             recurrent weight Uh
    h_out_ref : (Bp, Hp)             final hidden state (written on last block)
    h_scratch : (Bp, Hp) f32         hidden state carried across grid steps
    """
    tb = pl.program_id(0)
    t_block = xproj_ref.shape[0]
    hp = uh_ref.shape[0]

    @pl.when(tb == 0)
    def _():
        h_scratch[...] = jnp.zeros_like(h_scratch)

    uzr = uzr_ref[...]   # resident across all grid steps (constant index_map)
    uh = uh_ref[...]

    def step(i, h):
        xzrh = xproj_ref[i]                              # (Bp, 3*Hp)
        zr = jax.nn.sigmoid(
            xzrh[:, : 2 * hp]
            + jnp.dot(h, uzr, preferred_element_type=jnp.float32))
        z = zr[:, :hp]
        r = zr[:, hp:]
        h_tilde = jnp.tanh(
            xzrh[:, 2 * hp:]
            + jnp.dot(r * h, uh, preferred_element_type=jnp.float32))
        return z * h + (1.0 - z) * h_tilde

    # Fully unrolled inner time loop: h stays in vregs across the block.
    h = jax.lax.fori_loop(0, t_block, step, h_scratch[...], unroll=True)
    h_scratch[...] = h

    @pl.when(tb == pl.num_programs(0) - 1)
    def _():
        h_out_ref[...] = h.astype(h_out_ref.dtype)


def gru_forward(x, params, *, t_block=8):
    """x: (batch, seq_length, input_dim) float32 -> logits (batch, num_classes)."""
    batch, seq_length, input_dim = x.shape
    hidden = params["Wz"].shape[1]

    hidden_p = _round_up(hidden, 128)      # lane-dense hidden dim
    batch_p = _round_up(batch, 8)          # sublane-aligned batch
    t_block = max(1, min(t_block, seq_length))
    seq_p = _round_up(seq_length, t_block)

    f32 = jnp.float32
    pad_cols = lambda w: jnp.pad(w, ((0, 0), (0, hidden_p - hidden)))
    pad_hh = lambda w: jnp.pad(
        w, ((0, hidden_p - hidden), (0, hidden_p - hidden)))

    # Fused + padded weights. Padded hidden columns of W/U/b are zero, so the
    # padded components of h stay exactly 0 for all t (and never contaminate
    # real columns since the corresponding U rows are zero too).
    w_zrh = jnp.concatenate(
        [pad_cols(params["Wz"]), pad_cols(params["Wr"]), pad_cols(params["Wh"])],
        axis=1)                                                  # (D, 3*Hp)
    b_zrh = jnp.concatenate(
        [pad_cols(params["bz"]), pad_cols(params["br"]), pad_cols(params["bh"])],
        axis=1)                                                  # (1, 3*Hp)
    u_zr = jnp.concatenate(
        [pad_hh(params["Uz"]), pad_hh(params["Ur"])], axis=1)    # (Hp, 2*Hp)
    u_h = pad_hh(params["Uh"])                                   # (Hp, Hp)
    # TODO(synk): for large H, cast u_zr/u_h (and h before the dots) to bf16
    # to halve resident VMEM and double MXU throughput on v6e/v7x.

    # Hoisted input projection: one big (S*Bp, D) x (D, 3*Hp) matmul, outside
    # the sequential recurrence.
    x_tm = jnp.transpose(x, (1, 0, 2)).astype(f32)               # (S, B, D)
    x_tm = jnp.pad(x_tm, ((0, 0), (0, batch_p - batch), (0, 0)))  # (S, Bp, D)
    xproj = x_tm.reshape(seq_length * batch_p, input_dim) @ w_zrh + b_zrh
    xproj = xproj.reshape(seq_length, batch_p, 3 * hidden_p)

    if seq_p > seq_length:
        # Identity padding steps: force z == 1 exactly so h_t = h_{t-1}.
        pad_blk = jnp.zeros((seq_p - seq_length, batch_p, 3 * hidden_p), f32)
        pad_blk = pad_blk.at[:, :, :hidden_p].set(1e4)
        xproj = jnp.concatenate([xproj, pad_blk], axis=0)

    n_blocks = seq_p // t_block
    const2d = lambda tb: (0, 0)

    # VMEM budget: double-buffered x block + resident fused U weights + state.
    xblk_bytes = t_block * batch_p * 3 * hidden_p * 4
    w_bytes = (hidden_p * 2 * hidden_p + hidden_p * hidden_p) * 4
    state_bytes = batch_p * hidden_p * 4
    vmem_bytes = 2 * (xblk_bytes + w_bytes + state_bytes) + state_bytes + (2 << 20)
    vmem_limit = int(min(max(vmem_bytes, 32 << 20), 64 << 20))

    cost = pl.CostEstimate(
        flops=int(2 * seq_p * batch_p * hidden_p * 3 * hidden_p),
        transcendentals=int(3 * seq_p * batch_p * hidden_p),
        bytes_accessed=int(xproj.size * 4 + w_bytes + state_bytes),
    )

    h_final = pl.pallas_call(
        _gru_recurrent_kernel,
        out_shape=jax.ShapeDtypeStruct((batch_p, hidden_p), f32),
        grid_spec=pltpu.PrefetchScalarGridSpec(
            num_scalar_prefetch=0,
            grid=(n_blocks,),
            in_specs=[
                # streamed block of precomputed projections for T_BLOCK steps
                pl.BlockSpec((t_block, batch_p, 3 * hidden_p),
                             lambda tb: (tb, 0, 0)),
                # recurrent weights: whole-array blocks, resident across time
                pl.BlockSpec((hidden_p, 2 * hidden_p), const2d),
                pl.BlockSpec((hidden_p, hidden_p), const2d),
            ],
            out_specs=pl.BlockSpec((batch_p, hidden_p), const2d),
            scratch_shapes=[pltpu.VMEM((batch_p, hidden_p), jnp.float32)],
        ),
        compiler_params=pltpu.CompilerParams(
            dimension_semantics=("arbitrary",),   # time recurrence: sequential
            vmem_limit_bytes=vmem_limit,
        ),
        cost_estimate=cost,
    )(xproj, u_zr, u_h)

    # Classifier head in plain XLA (used once; keeps Wp/bp out of kernel VMEM).
    h_last = h_final[:batch, :hidden]
    return h_last @ params["Wp"] + params["bp"]


def init_gru_params(key, input_dim, hidden_dim, num_classes):
    """Deterministic uniform(-1/sqrt(H), 1/sqrt(H)) init (PyTorch-style)."""
    ks = jax.random.split(key, 11)
    s = 1.0 / jnp.sqrt(jnp.float32(hidden_dim))
    u = lambda k, shape: jax.random.uniform(
        k, shape, dtype=jnp.float32, minval=-s, maxval=s)
    return {
        "Wz": u(ks[0], (input_dim, hidden_dim)),
        "Wr": u(ks[1], (input_dim, hidden_dim)),
        "Wh": u(ks[2], (input_dim, hidden_dim)),
        "Uz": u(ks[3], (hidden_dim, hidden_dim)),
        "Ur": u(ks[4], (hidden_dim, hidden_dim)),
        "Uh": u(ks[5], (hidden_dim, hidden_dim)),
        "bz": u(ks[6], (1, hidden_dim)),
        "br": u(ks[7], (1, hidden_dim)),
        "bh": u(ks[8], (1, hidden_dim)),
        "Wp": u(ks[9], (hidden_dim, num_classes)),
        "bp": u(ks[10], (1, num_classes)),
    }


def gru_forward_ref(x, params):
    """Pure-JAX reference for correctness checking."""
    batch = x.shape[0]
    hidden_dim = params["Wz"].shape[1]
    h = jnp.zeros((batch, hidden_dim), jnp.float32)
    for t in range(x.shape[1]):
        x_t = x[:, t, :]
        z = jax.nn.sigmoid(x_t @ params["Wz"] + h @ params["Uz"] + params["bz"])
        r = jax.nn.sigmoid(x_t @ params["Wr"] + h @ params["Ur"] + params["br"])
        h_t = jnp.tanh(x_t @ params["Wh"] + (r * h) @ params["Uh"] + params["bh"])
        h = z * h + (1.0 - z) * h_t
    return h @ params["Wp"] + params["bp"]


if __name__ == "__main__":
    # small shapes consistent with the module's constructor
    seq_length, input_dim, hidden_dim, num_classes, batch_size = 8, 4, 32, 10, 8

    key = jax.random.PRNGKey(0)
    k_x, k_p = jax.random.split(key)
    x = jax.random.normal(k_x, (batch_size, seq_length, input_dim), jnp.float32)
    params = init_gru_params(k_p, input_dim, hidden_dim, num_classes)

    logits = gru_forward(x, params, t_block=8)
    logits = jax.block_until_ready(logits)

    ref = gru_forward_ref(x, params)
    assert logits.shape == (batch_size, num_classes)
    assert jnp.allclose(logits, ref, atol=1e-4, rtol=1e-4), "mismatch vs reference"

    print("KERNEL_OK")
</pallas_src>

<mosaic_0001>
module attributes {stable_mosaic.version = 11 : i64} {
  func.func @_gru_recurrent_kernel(%arg0: i32, %arg1: memref<8x8x384xf32, #tpu.memory_space<vmem>>, %arg2: memref<128x256xf32, #tpu.memory_space<vmem>>, %arg3: memref<128x128xf32, #tpu.memory_space<vmem>>, %arg4: memref<8x128xf32, #tpu.memory_space<vmem>>, %arg5: memref<8x128xf32, #tpu.memory_space<vmem>>) attributes {dimension_semantics = [#tpu.dimension_semantics<arbitrary>], iteration_bounds = array<i64: 1>, scalar_prefetch = 0 : i64, scratch_operands = 1 : i64, tpu.core_type = #tpu.core_type<tc>, window_params = [{transform_indices = @transform_0, window_bounds = array<i64: 8, 8, 384>}, {pipeline_mode = #tpu.pipeline_mode<synchronous>, transform_indices = @transform_1, window_bounds = array<i64: 128, 256>}, {pipeline_mode = #tpu.pipeline_mode<synchronous>, transform_indices = @transform_2, window_bounds = array<i64: 128, 128>}, {pipeline_mode = #tpu.pipeline_mode<synchronous>, transform_indices = @transform_3, window_bounds = array<i64: 8, 128>}]} {
    %c0_i32 = arith.constant 0 : i32
    %0 = arith.cmpi eq, %arg0, %c0_i32 : i32
    %1 = arith.extui %0 : i1 to i32
    %c0_i32_0 = arith.constant 0 : i32
    %2 = arith.cmpi ne, %1, %c0_i32_0 : i32
    scf.if %2 {
      %cst_58 = arith.constant 0.000000e+00 : f32
      %194 = vector.broadcast %cst_58 : f32 to vector<8x128xf32>
      %c0_59 = arith.constant 0 : index
      %c0_60 = arith.constant 0 : index
      %195 = vector.load %arg5[%c0_59, %c0_60] : memref<8x128xf32, #tpu.memory_space<vmem>>, vector<8x128xf32>
      tpu.vector_store %arg5[%c0_59, %c0_60], %194 {strides = array<i32>} : memref<8x128xf32, #tpu.memory_space<vmem>>, vector<8x128xf32>,
    } else {
    }
    %c0 = arith.constant 0 : index
    %c0_1 = arith.constant 0 : index
    %3 = vector.load %arg2[%c0, %c0_1] : memref<128x256xf32, #tpu.memory_space<vmem>>, vector<128x256xf32>
    %c0_2 = arith.constant 0 : index
    %c0_3 = arith.constant 0 : index
    %4 = vector.load %arg3[%c0_2, %c0_3] : memref<128x128xf32, #tpu.memory_space<vmem>>, vector<128x128xf32>
    %c0_4 = arith.constant 0 : index
    %c0_5 = arith.constant 0 : index
    %5 = vector.load %arg5[%c0_4, %c0_5] : memref<8x128xf32, #tpu.memory_space<vmem>>, vector<8x128xf32>
    %c0_i32_6 = arith.constant 0 : i32
    %6 = arith.index_cast %c0_i32_6 : i32 to index
    %c0_7 = arith.constant 0 : index
    %c0_8 = arith.constant 0 : index
    %7 = vector.load %arg1[%6, %c0_7, %c0_8] : memref<8x8x384xf32, #tpu.memory_space<vmem>>, vector<1x8x384xf32>
    %8 = vector.shape_cast %7 : vector<1x8x384xf32> to vector<8x384xf32>
    %9 = vector.extract_strided_slice %8 {offsets = [0, 0], sizes = [8, 256], strides = [1, 1]} : vector<8x384xf32> to vector<8x256xf32>
    %cst = arith.constant dense<0.000000e+00> : vector<8x256xf32>
    %10 = tpu.matmul %5, %3, %cst {dimension_numbers = #tpu.dot_dimension_numbers<[1], [0], [0], [1], [0, 0, 1, 1], [], []>} : vector<8x128xf32>, vector<128x256xf32>, vector<8x256xf32> -> vector<8x256xf32>
    %11 = arith.addf %9, %10 : vector<8x256xf32>
    %12 = arith.negf %11 : vector<8x256xf32>
    %13 = math.exp %12 : vector<8x256xf32>
    %cst_9 = arith.constant 1.000000e+00 : f32
    %14 = vector.broadcast %cst_9 : f32 to vector<8x256xf32>
    %15 = arith.addf %14, %13 : vector<8x256xf32>
    %16 = arith.divf %14, %15 : vector<8x256xf32>
    %17 = vector.extract_strided_slice %16 {offsets = [0, 0], sizes = [8, 128], strides = [1, 1]} : vector<8x256xf32> to vector<8x128xf32>
    %18 = vector.extract_strided_slice %16 {offsets = [0, 128], sizes = [8, 128], strides = [1, 1]} : vector<8x256xf32> to vector<8x128xf32>
    %19 = vector.extract_strided_slice %8 {offsets = [0, 256], sizes = [8, 128], strides = [1, 1]} : vector<8x384xf32> to vector<8x128xf32>
    %20 = arith.mulf %18, %5 : vector<8x128xf32>
    %cst_10 = arith.constant dense<0.000000e+00> : vector<8x128xf32>
    %21 = tpu.matmul %20, %4, %cst_10 {dimension_numbers = #tpu.dot_dimension_numbers<[1], [0], [0], [1], [0, 0, 1, 1], [], []>} : vector<8x128xf32>, vector<128x128xf32>, vector<8x128xf32> -> vector<8x128xf32>
    %22 = arith.addf %19, %21 : vector<8x128xf32>
    %23 = math.tanh %22 : vector<8x128xf32>
    %24 = arith.mulf %17, %5 : vector<8x128xf32>
    %cst_11 = arith.constant 1.000000e+00 : f32
    %25 = vector.broadcast %cst_11 : f32 to vector<8x128xf32>
    %26 = arith.subf %25, %17 : vector<8x128xf32>
    %27 = arith.mulf %26, %23 : vector<8x128xf32>
    %28 = arith.addf %24, %27 : vector<8x128xf32>
    %c1_i32 = arith.constant 1 : i32
    %29 = arith.index_cast %c1_i32 : i32 to index
    %c0_12 = arith.constant 0 : index
    %c0_13 = arith.constant 0 : index
    %30 = vector.load %arg1[%29, %c0_12, %c0_13] : memref<8x8x384xf32, #tpu.memory_space<vmem>>, vector<1x8x384xf32>
    %31 = vector.shape_cast %30 : vector<1x8x384xf32> to vector<8x384xf32>
    %32 = vector.extract_strided_slice %31 {offsets = [0, 0], sizes = [8, 256], strides = [1, 1]} : vector<8x384xf32> to vector<8x256xf32>
    %cst_14 = arith.constant dense<0.000000e+00> : vector<8x256xf32>
    %33 = tpu.matmul %28, %3, %cst_14 {dimension_numbers = #tpu.dot_dimension_numbers<[1], [0], [0], [1], [0, 0, 1, 1], [], []>} : vector<8x128xf32>, vector<128x256xf32>, vector<8x256xf32> -> vector<8x256xf32>
    %34 = arith.addf %32, %33 : vector<8x256xf32>
    %35 = arith.negf %34 : vector<8x256xf32>
    %36 = math.exp %35 : vector<8x256xf32>
    %cst_15 = arith.constant 1.000000e+00 : f32
    %37 = vector.broadcast %cst_15 : f32 to vector<8x256xf32>
    %38 = arith.addf %37, %36 : vector<8x256xf32>
    %39 = arith.divf %37, %38 : vector<8x256xf32>
    %40 = vector.extract_strided_slice %39 {offsets = [0, 0], sizes = [8, 128], strides = [1, 1]} : vector<8x256xf32> to vector<8x128xf32>
    %41 = vector.extract_strided_slice %39 {offsets = [0, 128], sizes = [8, 128], strides = [1, 1]} : vector<8x256xf32> to vector<8x128xf32>
    %42 = vector.extract_strided_slice %31 {offsets = [0, 256], sizes = [8, 128], strides = [1, 1]} : vector<8x384xf32> to vector<8x128xf32>
    %43 = arith.mulf %41, %28 : vector<8x128xf32>
    %cst_16 = arith.constant dense<0.000000e+00> : vector<8x128xf32>
    %44 = tpu.matmul %43, %4, %cst_16 {dimension_numbers = #tpu.dot_dimension_numbers<[1], [0], [0], [1], [0, 0, 1, 1], [], []>} : vector<8x128xf32>, vector<128x128xf32>, vector<8x128xf32> -> vector<8x128xf32>
    %45 = arith.addf %42, %44 : vector<8x128xf32>
    %46 = math.tanh %45 : vector<8x128xf32>
    %47 = arith.mulf %40, %28 : vector<8x128xf32>
    %cst_17 = arith.constant 1.000000e+00 : f32
    %48 = vector.broadcast %cst_17 : f32 to vector<8x128xf32>
    %49 = arith.subf %48, %40 : vector<8x128xf32>
    %50 = arith.mulf %49, %46 : vector<8x128xf32>
    %51 = arith.addf %47, %50 : vector<8x128xf32>
    %c2_i32 = arith.constant 2 : i32
    %52 = arith.index_cast %c2_i32 : i32 to index
    %c0_18 = arith.constant 0 : index
    %c0_19 = arith.constant 0 : index
    %53 = vector.load %arg1[%52, %c0_18, %c0_19] : memref<8x8x384xf32, #tpu.memory_space<vmem>>, vector<1x8x384xf32>
    %54 = vector.shape_cast %53 : vector<1x8x384xf32> to vector<8x384xf32>
    %55 = vector.extract_strided_slice %54 {offsets = [0, 0], sizes = [8, 256], strides = [1, 1]} : vector<8x384xf32> to vector<8x256xf32>
    %cst_20 = arith.constant dense<0.000000e+00> : vector<8x256xf32>
    %56 = tpu.matmul %51, %3, %cst_20 {dimension_numbers = #tpu.dot_dimension_numbers<[1], [0], [0], [1], [0, 0, 1, 1], [], []>} : vector<8x128xf32>, vector<128x256xf32>, vector<8x256xf32> -> vector<8x256xf32>
    %57 = arith.addf %55, %56 : vector<8x256xf32>
    %58 = arith.negf %57 : vector<8x256xf32>
    %59 = math.exp %58 : vector<8x256xf32>
    %cst_21 = arith.constant 1.000000e+00 : f32
    %60 = vector.broadcast %cst_21 : f32 to vector<8x256xf32>
    %61 = arith.addf %60, %59 : vector<8x256xf32>
    %62 = arith.divf %60, %61 : vector<8x256xf32>
    %63 = vector.extract_strided_slice %62 {offsets = [0, 0], sizes = [8, 128], strides = [1, 1]} : vector<8x256xf32> to vector<8x128xf32>
    %64 = vector.extract_strided_slice %62 {offsets = [0, 128], sizes = [8, 128], strides = [1, 1]} : vector<8x256xf32> to vector<8x128xf32>
    %65 = vector.extract_strided_slice %54 {offsets = [0, 256], sizes = [8, 128], strides = [1, 1]} : vector<8x384xf32> to vector<8x128xf32>
    %66 = arith.mulf %64, %51 : vector<8x128xf32>
    %cst_22 = arith.constant dense<0.000000e+00> : vector<8x128xf32>
    %67 = tpu.matmul %66, %4, %cst_22 {dimension_numbers = #tpu.dot_dimension_numbers<[1], [0], [0], [1], [0, 0, 1, 1], [], []>} : vector<8x128xf32>, vector<128x128xf32>, vector<8x128xf32> -> vector<8x128xf32>
    %68 = arith.addf %65, %67 : vector<8x128xf32>
    %69 = math.tanh %68 : vector<8x128xf32>
    %70 = arith.mulf %63, %51 : vector<8x128xf32>
    %cst_23 = arith.constant 1.000000e+00 : f32
    %71 = vector.broadcast %cst_23 : f32 to vector<8x128xf32>
    %72 = arith.subf %71, %63 : vector<8x128xf32>
    %73 = arith.mulf %72, %69 : vector<8x128xf32>
    %74 = arith.addf %70, %73 : vector<8x128xf32>
    %c3_i32 = arith.constant 3 : i32
    %75 = arith.index_cast %c3_i32 : i32 to index
    %c0_24 = arith.constant 0 : index
    %c0_25 = arith.constant 0 : index
    %76 = vector.load %arg1[%75, %c0_24, %c0_25] : memref<8x8x384xf32, #tpu.memory_space<vmem>>, vector<1x8x384xf32>
    %77 = vector.shape_cast %76 : vector<1x8x384xf32> to vector<8x384xf32>
    %78 = vector.extract_strided_slice %77 {offsets = [0, 0], sizes = [8, 256], strides = [1, 1]} : vector<8x384xf32> to vector<8x256xf32>
    %cst_26 = arith.constant dense<0.000000e+00> : vector<8x256xf32>
    %79 = tpu.matmul %74, %3, %cst_26 {dimension_numbers = #tpu.dot_dimension_numbers<[1], [0], [0], [1], [0, 0, 1, 1], [], []>} : vector<8x128xf32>, vector<128x256xf32>, vector<8x256xf32> -> vector<8x256xf32>
    %80 = arith.addf %78, %79 : vector<8x256xf32>
    %81 = arith.negf %80 : vector<8x256xf32>
    %82 = math.exp %81 : vector<8x256xf32>
    %cst_27 = arith.constant 1.000000e+00 : f32
    %83 = vector.broadcast %cst_27 : f32 to vector<8x256xf32>
    %84 = arith.addf %83, %82 : vector<8x256xf32>
    %85 = arith.divf %83, %84 : vector<8x256xf32>
    %86 = vector.extract_strided_slice %85 {offsets = [0, 0], sizes = [8, 128], strides = [1, 1]} : vector<8x256xf32> to vector<8x128xf32>
    %87 = vector.extract_strided_slice %85 {offsets = [0, 128], sizes = [8, 128], strides = [1, 1]} : vector<8x256xf32> to vector<8x128xf32>
    %88 = vector.extract_strided_slice %77 {offsets = [0, 256], sizes = [8, 128], strides = [1, 1]} : vector<8x384xf32> to vector<8x128xf32>
    %89 = arith.mulf %87, %74 : vector<8x128xf32>
    %cst_28 = arith.constant dense<0.000000e+00> : vector<8x128xf32>
    %90 = tpu.matmul %89, %4, %cst_28 {dimension_numbers = #tpu.dot_dimension_numbers<[1], [0], [0], [1], [0, 0, 1, 1], [], []>} : vector<8x128xf32>, vector<128x128xf32>, vector<8x128xf32> -> vector<8x128xf32>
    %91 = arith.addf %88, %90 : vector<8x128xf32>
    %92 = math.tanh %91 : vector<8x128xf32>
    %93 = arith.mulf %86, %74 : vector<8x128xf32>
    %cst_29 = arith.constant 1.000000e+00 : f32
    %94 = vector.broadcast %cst_29 : f32 to vector<8x128xf32>
    %95 = arith.subf %94, %86 : vector<8x128xf32>
    %96 = arith.mulf %95, %92 : vector<8x128xf32>
    %97 = arith.addf %93, %96 : vector<8x128xf32>
    %c4_i32 = arith.constant 4 : i32
    %98 = arith.index_cast %c4_i32 : i32 to index
    %c0_30 = arith.constant 0 : index
    %c0_31 = arith.constant 0 : index
    %99 = vector.load %arg1[%98, %c0_30, %c0_31] : memref<8x8x384xf32, #tpu.memory_space<vmem>>, vector<1x8x384xf32>
    %100 = vector.shape_cast %99 : vector<1x8x384xf32> to vector<8x384xf32>
    %101 = vector.extract_strided_slice %100 {offsets = [0, 0], sizes = [8, 256], strides = [1, 1]} : vector<8x384xf32> to vector<8x256xf32>
    %cst_32 = arith.constant dense<0.000000e+00> : vector<8x256xf32>
    %102 = tpu.matmul %97, %3, %cst_32 {dimension_numbers = #tpu.dot_dimension_numbers<[1], [0], [0], [1], [0, 0, 1, 1], [], []>} : vector<8x128xf32>, vector<128x256xf32>, vector<8x256xf32> -> vector<8x256xf32>
    %103 = arith.addf %101, %102 : vector<8x256xf32>
    %104 = arith.negf %103 : vector<8x256xf32>
    %105 = math.exp %104 : vector<8x256xf32>
    %cst_33 = arith.constant 1.000000e+00 : f32
    %106 = vector.broadcast %cst_33 : f32 to vector<8x256xf32>
    %107 = arith.addf %106, %105 : vector<8x256xf32>
    %108 = arith.divf %106, %107 : vector<8x256xf32>
    %109 = vector.extract_strided_slice %108 {offsets = [0, 0], sizes = [8, 128], strides = [1, 1]} : vector<8x256xf32> to vector<8x128xf32>
    %110 = vector.extract_strided_slice %108 {offsets = [0, 128], sizes = [8, 128], strides = [1, 1]} : vector<8x256xf32> to vector<8x128xf32>
    %111 = vector.extract_strided_slice %100 {offsets = [0, 256], sizes = [8, 128], strides = [1, 1]} : vector<8x384xf32> to vector<8x128xf32>
    %112 = arith.mulf %110, %97 : vector<8x128xf32>
    %cst_34 = arith.constant dense<0.000000e+00> : vector<8x128xf32>
    %113 = tpu.matmul %112, %4, %cst_34 {dimension_numbers = #tpu.dot_dimension_numbers<[1], [0], [0], [1], [0, 0, 1, 1], [], []>} : vector<8x128xf32>, vector<128x128xf32>, vector<8x128xf32> -> vector<8x128xf32>
    %114 = arith.addf %111, %113 : vector<8x128xf32>
    %115 = math.tanh %114 : vector<8x128xf32>
    %116 = arith.mulf %109, %97 : vector<8x128xf32>
    %cst_35 = arith.constant 1.000000e+00 : f32
    %117 = vector.broadcast %cst_35 : f32 to vector<8x128xf32>
    %118 = arith.subf %117, %109 : vector<8x128xf32>
    %119 = arith.mulf %118, %115 : vector<8x128xf32>
    %120 = arith.addf %116, %119 : vector<8x128xf32>
    %c5_i32 = arith.constant 5 : i32
    %121 = arith.index_cast %c5_i32 : i32 to index
    %c0_36 = arith.constant 0 : index
    %c0_37 = arith.constant 0 : index
    %122 = vector.load %arg1[%121, %c0_36, %c0_37] : memref<8x8x384xf32, #tpu.memory_space<vmem>>, vector<1x8x384xf32>
    %123 = vector.shape_cast %122 : vector<1x8x384xf32> to vector<8x384xf32>
    %124 = vector.extract_strided_slice %123 {offsets = [0, 0], sizes = [8, 256], strides = [1, 1]} : vector<8x384xf32> to vector<8x256xf32>
    %cst_38 = arith.constant dense<0.000000e+00> : vector<8x256xf32>
    %125 = tpu.matmul %120, %3, %cst_38 {dimension_numbers = #tpu.dot_dimension_numbers<[1], [0], [0], [1], [0, 0, 1, 1], [], []>} : vector<8x128xf32>, vector<128x256xf32>, vector<8x256xf32> -> vector<8x256xf32>
    %126 = arith.addf %124, %125 : vector<8x256xf32>
    %127 = arith.negf %126 : vector<8x256xf32>
    %128 = math.exp %127 : vector<8x256xf32>
    %cst_39 = arith.constant 1.000000e+00 : f32
    %129 = vector.broadcast %cst_39 : f32 to vector<8x256xf32>
    %130 = arith.addf %129, %128 : vector<8x256xf32>
    %131 = arith.divf %129, %130 : vector<8x256xf32>
    %132 = vector.extract_strided_slice %131 {offsets = [0, 0], sizes = [8, 128], strides = [1, 1]} : vector<8x256xf32> to vector<8x128xf32>
    %133 = vector.extract_strided_slice %131 {offsets = [0, 128], sizes = [8, 128], strides = [1, 1]} : vector<8x256xf32> to vector<8x128xf32>
    %134 = vector.extract_strided_slice %123 {offsets = [0, 256], sizes = [8, 128], strides = [1, 1]} : vector<8x384xf32> to vector<8x128xf32>
    %135 = arith.mulf %133, %120 : vector<8x128xf32>
    %cst_40 = arith.constant dense<0.000000e+00> : vector<8x128xf32>
    %136 = tpu.matmul %135, %4, %cst_40 {dimension_numbers = #tpu.dot_dimension_numbers<[1], [0], [0], [1], [0, 0, 1, 1], [], []>} : vector<8x128xf32>, vector<128x128xf32>, vector<8x128xf32> -> vector<8x128xf32>
    %137 = arith.addf %134, %136 : vector<8x128xf32>
    %138 = math.tanh %137 : vector<8x128xf32>
    %139 = arith.mulf %132, %120 : vector<8x128xf32>
    %cst_41 = arith.constant 1.000000e+00 : f32
    %140 = vector.broadcast %cst_41 : f32 to vector<8x128xf32>
    %141 = arith.subf %140, %132 : vector<8x128xf32>
    %142 = arith.mulf %141, %138 : vector<8x128xf32>
    %143 = arith.addf %139, %142 : vector<8x128xf32>
    %c6_i32 = arith.constant 6 : i32
    %144 = arith.index_cast %c6_i32 : i32 to index
    %c0_42 = arith.constant 0 : index
    %c0_43 = arith.constant 0 : index
    %145 = vector.load %arg1[%144, %c0_42, %c0_43] : memref<8x8x384xf32, #tpu.memory_space<vmem>>, vector<1x8x384xf32>
    %146 = vector.shape_cast %145 : vector<1x8x384xf32> to vector<8x384xf32>
    %147 = vector.extract_strided_slice %146 {offsets = [0, 0], sizes = [8, 256], strides = [1, 1]} : vector<8x384xf32> to vector<8x256xf32>
    %cst_44 = arith.constant dense<0.000000e+00> : vector<8x256xf32>
    %148 = tpu.matmul %143, %3, %cst_44 {dimension_numbers = #tpu.dot_dimension_numbers<[1], [0], [0], [1], [0, 0, 1, 1], [], []>} : vector<8x128xf32>, vector<128x256xf32>, vector<8x256xf32> -> vector<8x256xf32>
    %149 = arith.addf %147, %148 : vector<8x256xf32>
    %150 = arith.negf %149 : vector<8x256xf32>
    %151 = math.exp %150 : vector<8x256xf32>
    %cst_45 = arith.constant 1.000000e+00 : f32
    %152 = vector.broadcast %cst_45 : f32 to vector<8x256xf32>
    %153 = arith.addf %152, %151 : vector<8x256xf32>
    %154 = arith.divf %152, %153 : vector<8x256xf32>
    %155 = vector.extract_strided_slice %154 {offsets = [0, 0], sizes = [8, 128], strides = [1, 1]} : vector<8x256xf32> to vector<8x128xf32>
    %156 = vector.extract_strided_slice %154 {offsets = [0, 128], sizes = [8, 128], strides = [1, 1]} : vector<8x256xf32> to vector<8x128xf32>
    %157 = vector.extract_strided_slice %146 {offsets = [0, 256], sizes = [8, 128], strides = [1, 1]} : vector<8x384xf32> to vector<8x128xf32>
    %158 = arith.mulf %156, %143 : vector<8x128xf32>
    %cst_46 = arith.constant dense<0.000000e+00> : vector<8x128xf32>
    %159 = tpu.matmul %158, %4, %cst_46 {dimension_numbers = #tpu.dot_dimension_numbers<[1], [0], [0], [1], [0, 0, 1, 1], [], []>} : vector<8x128xf32>, vector<128x128xf32>, vector<8x128xf32> -> vector<8x128xf32>
    %160 = arith.addf %157, %159 : vector<8x128xf32>
    %161 = math.tanh %160 : vector<8x128xf32>
    %162 = arith.mulf %155, %143 : vector<8x128xf32>
    %cst_47 = arith.constant 1.000000e+00 : f32
    %163 = vector.broadcast %cst_47 : f32 to vector<8x128xf32>
    %164 = arith.subf %163, %155 : vector<8x128xf32>
    %165 = arith.mulf %164, %161 : vector<8x128xf32>
    %166 = arith.addf %162, %165 : vector<8x128xf32>
    %c7_i32 = arith.constant 7 : i32
    %167 = arith.index_cast %c7_i32 : i32 to index
    %c0_48 = arith.constant 0 : index
    %c0_49 = arith.constant 0 : index
    %168 = vector.load %arg1[%167, %c0_48, %c0_49] : memref<8x8x384xf32, #tpu.memory_space<vmem>>, vector<1x8x384xf32>
    %169 = vector.shape_cast %168 : vector<1x8x384xf32> to vector<8x384xf32>
    %170 = vector.extract_strided_slice %169 {offsets = [0, 0], sizes = [8, 256], strides = [1, 1]} : vector<8x384xf32> to vector<8x256xf32>
    %cst_50 = arith.constant dense<0.000000e+00> : vector<8x256xf32>
    %171 = tpu.matmul %166, %3, %cst_50 {dimension_numbers = #tpu.dot_dimension_numbers<[1], [0], [0], [1], [0, 0, 1, 1], [], []>} : vector<8x128xf32>, vector<128x256xf32>, vector<8x256xf32> -> vector<8x256xf32>
    %172 = arith.addf %170, %171 : vector<8x256xf32>
    %173 = arith.negf %172 : vector<8x256xf32>
    %174 = math.exp %173 : vector<8x256xf32>
    %cst_51 = arith.constant 1.000000e+00 : f32
    %175 = vector.broadcast %cst_51 : f32 to vector<8x256xf32>
    %176 = arith.addf %175, %174 : vector<8x256xf32>
    %177 = arith.divf %175, %176 : vector<8x256xf32>
    %178 = vector.extract_strided_slice %177 {offsets = [0, 0], sizes = [8, 128], strides = [1, 1]} : vector<8x256xf32> to vector<8x128xf32>
    %179 = vector.extract_strided_slice %177 {offsets = [0, 128], sizes = [8, 128], strides = [1, 1]} : vector<8x256xf32> to vector<8x128xf32>
    %180 = vector.extract_strided_slice %169 {offsets = [0, 256], sizes = [8, 128], strides = [1, 1]} : vector<8x384xf32> to vector<8x128xf32>
    %181 = arith.mulf %179, %166 : vector<8x128xf32>
    %cst_52 = arith.constant dense<0.000000e+00> : vector<8x128xf32>
    %182 = tpu.matmul %181, %4, %cst_52 {dimension_numbers = #tpu.dot_dimension_numbers<[1], [0], [0], [1], [0, 0, 1, 1], [], []>} : vector<8x128xf32>, vector<128x128xf32>, vector<8x128xf32> -> vector<8x128xf32>
    %183 = arith.addf %180, %182 : vector<8x128xf32>
    %184 = math.tanh %183 : vector<8x128xf32>
    %185 = arith.mulf %178, %166 : vector<8x128xf32>
    %cst_53 = arith.constant 1.000000e+00 : f32
    %186 = vector.broadcast %cst_53 : f32 to vector<8x128xf32>
    %187 = arith.subf %186, %178 : vector<8x128xf32>
    %188 = arith.mulf %187, %184 : vector<8x128xf32>
    %189 = arith.addf %185, %188 : vector<8x128xf32>
    %c8_i32 = arith.constant 8 : i32
    %c0_54 = arith.constant 0 : index
    %c0_55 = arith.constant 0 : index
    %190 = vector.load %arg5[%c0_54, %c0_55] : memref<8x128xf32, #tpu.memory_space<vmem>>, vector<8x128xf32>
    tpu.vector_store %arg5[%c0_54, %c0_55], %189 {strides = array<i32>} : memref<8x128xf32, #tpu.memory_space<vmem>>, vector<8x128xf32>,
    %c0_i32_56 = arith.constant 0 : i32
    %191 = arith.cmpi eq, %arg0, %c0_i32_56 : i32
    %192 = arith.extui %191 : i1 to i32
    %c0_i32_57 = arith.constant 0 : i32
    %193 = arith.cmpi ne, %192, %c0_i32_57 : i32
    scf.if %193 {
      %c0_58 = arith.constant 0 : index
      %c0_59 = arith.constant 0 : index
      %194 = vector.load %arg4[%c0_58, %c0_59] : memref<8x128xf32, #tpu.memory_space<vmem>>, vector<8x128xf32>
      tpu.vector_store %arg4[%c0_58, %c0_59], %189 {strides = array<i32>} : memref<8x128xf32, #tpu.memory_space<vmem>>, vector<8x128xf32>,
    } else {
    }
    return
  }
  func.func @transform_0(%arg0: i32) -> (i32, i32, i32) {
    %c0_i32 = arith.constant 0 : i32
    %c0_i32_0 = arith.constant 0 : i32
    %c0_i32_1 = arith.constant 0 : i32
    return %arg0, %c0_i32, %c0_i32_0 : i32, i32, i32
  }
  func.func @transform_1(%arg0: i32) -> (i32, i32) {
    %c0_i32 = arith.constant 0 : i32
    %c0_i32_0 = arith.constant 0 : i32
    %c0_i32_1 = arith.constant 0 : i32
    return %c0_i32, %c0_i32_0 : i32, i32
  }
  func.func @transform_2(%arg0: i32) -> (i32, i32) {
    %c0_i32 = arith.constant 0 : i32
    %c0_i32_0 = arith.constant 0 : i32
    %c0_i32_1 = arith.constant 0 : i32
    return %c0_i32, %c0_i32_0 : i32, i32
  }
  func.func @transform_3(%arg0: i32) -> (i32, i32) {
    %c0_i32 = arith.constant 0 : i32
    %c0_i32_0 = arith.constant 0 : i32
    %c0_i32_1 = arith.constant 0 : i32
    return %c0_i32, %c0_i32_0 : i32, i32
  }
}

</mosaic_0001>

<llo_original>
// kernel: tpu_custom_call.1
$region0: #{tpu_custom_call.1}
  #allocation0 [shape = 'u32[]', space=smem, size = 0x4, offset = 0x4, fixed_abs, tag = 'smem constant byte address 0x4 - core index']
  #allocation1 [shape = 'u32[144,128]{1,0:T(1,128)}', space=vmem, size = 0x12000, scoped, tag = 'internal scratch']
  #allocation2 [shape = 'f32[8,128]{1,0:T(8,128)}', space=vmem, size = 0x1000, scoped, tag = 'scratch operand']
  %s0 = inlined_call_operand.hbm [shape: f32[8,8,384], index: 0, kind: input, shape index: {}]
  %s1 = inlined_call_operand.hbm [shape: f32[128,256], index: 1, kind: input, shape index: {}]
  %s2 = inlined_call_operand.hbm [shape: f32[128,128], index: 2, kind: input, shape index: {}]
  %s3 = inlined_call_operand.hbm [shape: f32[8,128], index: 3, kind: output, shape index: {}]
  %s4 = sld [smem:[#allocation0]]
  $region42: #{tpu_custom_call.1} parent=0
    _
  %s6 = ssub.s32 1, %s4
  %s7 = scalar_select 0, %s6, %s4
  $region1: #{tpu_custom_call.1} parent=0
    #allocation3 [shape = 'u8[98304]{0}', space=vmem, size = 0x18000, scoped, tag = 'input window, operand 0, single buffered']
    #allocation4 [shape = 's32[1]{0}', space=sflag, size = 0x4, scoped, tag = 'scoped memory for tpu_custom_call.1']
    #allocation5 [shape = 's32[1]{0}', space=sflag, size = 0x4, scoped, tag = 'scoped memory for tpu_custom_call.1']
    #allocation6 [shape = 'u8[131072]{0}', space=vmem, size = 0x20000, scoped, tag = 'input window, operand 1, single buffered']
    #allocation7 [shape = 's32[1]{0}', space=sflag, size = 0x4, scoped, tag = 'scoped memory for tpu_custom_call.1']
    #allocation8 [shape = 'u8[65536]{0}', space=vmem, size = 0x10000, scoped, tag = 'input window, operand 2, single buffered']
    #allocation9 [shape = 'u8[4096]{0}', space=vmem, size = 0x1000, scoped, tag = 'output window, operand 0, single buffered']
    %8 = vsyncpa [#allocation4], 0
    %9 = vsyncpa [#allocation7], 0
    %10 = vsyncpa [#allocation5], 0
    // Predicated region
    $region2: #{tpu_custom_call.1} parent=1 // pred_check
      _
    $region3: #{tpu_custom_call.1} parent=1 // pred_check_branch
      %12 = sbr.rel (0) target = $region5
    $region4: #{tpu_custom_call.1} parent=1 // pred_region
      %s14 = ssub.s32 3072, 3072
      %15 = vsyncadd [#allocation4], %s14
      %s16 = sshll.u32 [#allocation3], 4
      %s17 = int_to_ptr.vmem [resolvable:$true] %s16
      %22 = dma.hbm_to_vmem [thread:$0]  %s0, 3072, %s17, [#allocation4], 384, 384, 24
    $region5: #{tpu_custom_call.1} parent=1 // pred_fallthru
      _
    // Predicated region
    $region6: #{tpu_custom_call.1} parent=1 // pred_check
      _
    $region7: #{tpu_custom_call.1} parent=1 // pred_check_branch
      %24 = sbr.rel (0) target = $region9
    $region8: #{tpu_custom_call.1} parent=1 // pred_region
      %s26 = ssub.s32 4096, 4096
      %27 = vsyncadd [#allocation7], %s26
      %s28 = sshll.u32 [#allocation6], 4
      %s29 = int_to_ptr.vmem [resolvable:$true] %s28
      %34 = dma.hbm_to_vmem [thread:$0]  %s1, 4096, %s29, [#allocation7], 256, 256, 16
    $region9: #{tpu_custom_call.1} parent=1 // pred_fallthru
      _
    // Predicated region
    $region10: #{tpu_custom_call.1} parent=1 // pred_check
      _
    $region11: #{tpu_custom_call.1} parent=1 // pred_check_branch
      %36 = sbr.rel (0) target = $region13
    $region12: #{tpu_custom_call.1} parent=1 // pred_region
      %s38 = ssub.s32 2048, 2048
      %39 = vsyncadd [#allocation7], %s38
      %s40 = sshll.u32 [#allocation8], 4
      %s41 = int_to_ptr.vmem [resolvable:$true] %s40
      %46 = dma.hbm_to_vmem [thread:$0]  %s2, 2048, %s41, [#allocation7], 128, 128, 8
    $region13: #{tpu_custom_call.1} parent=1 // pred_fallthru
      _
    // Predicated region
    $region14: #{tpu_custom_call.1} parent=1 // pred_check
      _
    $region15: #{tpu_custom_call.1} parent=1 // pred_check_branch
      %48 = sbr.rel (0) target = $region17
    $region16: #{tpu_custom_call.1} parent=1 // pred_region
      %49 = dma.done [#allocation4], 3072
    $region17: #{tpu_custom_call.1} parent=1 // pred_fallthru
      _
    // Predicated region
    $region18: #{tpu_custom_call.1} parent=1 // pred_check
      _
    $region19: #{tpu_custom_call.1} parent=1 // pred_check_branch
      %51 = sbr.rel (0) target = $region21
    $region20: #{tpu_custom_call.1} parent=1 // pred_region
      %52 = dma.done [#allocation7], 4096
    $region21: #{tpu_custom_call.1} parent=1 // pred_fallthru
      _
    // Predicated region
    $region22: #{tpu_custom_call.1} parent=1 // pred_check
      _
    $region23: #{tpu_custom_call.1} parent=1 // pred_check_branch
      %54 = sbr.rel (0) target = $region25
    $region24: #{tpu_custom_call.1} parent=1 // pred_region
      %55 = dma.done [#allocation7], 2048
    $region25: #{tpu_custom_call.1} parent=1 // pred_fallthru
      _
    %p56 = scmp.eq.s32.totalorder 0, 0
    // Predicated region
    $region26: #{tpu_custom_call.1} parent=1 // pred_check
      %p57 = pneg %p56
    $region27: #{tpu_custom_call.1} parent=1 // pred_check_branch
      %59 = sbr.rel (%p57) target = $region29
    $region28: #{tpu_custom_call.1} parent=1 // pred_region
      %60 = vst [vmem:[#allocation2] sm:$0xff] 0.0
    $region29: #{tpu_custom_call.1} parent=1 // pred_fallthru
      _
    %v61 = vld [vmem:[#allocation6] sm:$0xff]
    %v62 = vld [vmem:[#allocation6 + $0x8] sm:$0xff]
    %v63 = vld [vmem:[#allocation6 + $0x10] sm:$0xff]
    %v64 = vld [vmem:[#allocation6 + $0x18] sm:$0xff]
    %v65 = vld [vmem:[#allocation6 + $0x20] sm:$0xff]
    %v66 = vld [vmem:[#allocation6 + $0x28] sm:$0xff]
    %v67 = vld [vmem:[#allocation6 + $0x30] sm:$0xff]
    %v68 = vld [vmem:[#allocation6 + $0x38] sm:$0xff]
    %v69 = vld [vmem:[#allocation6 + $0x40] sm:$0xff]
    %v70 = vld [vmem:[#allocation6 + $0x48] sm:$0xff]
    %v71 = vld [vmem:[#allocation6 + $0x50] sm:$0xff]
    %v72 = vld [vmem:[#allocation6 + $0x58] sm:$0xff]
    %v73 = vld [vmem:[#allocation6 + $0x60] sm:$0xff]
    %v74 = vld [vmem:[#allocation6 + $0x68] sm:$0xff]
    %v75 = vld [vmem:[#allocation6 + $0x70] sm:$0xff]
    %v76 = vld [vmem:[#allocation6 + $0x78] sm:$0xff]
    %v77 = vld [vmem:[#allocation6 + $0x80] sm:$0xff]
    %v78 = vld [vmem:[#allocation6 + $0x88] sm:$0xff]
    %v79 = vld [vmem:[#allocation6 + $0x90] sm:$0xff]
    %v80 = vld [vmem:[#allocation6 + $0x98] sm:$0xff]
    %v81 = vld [vmem:[#allocation6 + $0xa0] sm:$0xff]
    %v82 = vld [vmem:[#allocation6 + $0xa8] sm:$0xff]
    %v83 = vld [vmem:[#allocation6 + $0xb0] sm:$0xff]
    %v84 = vld [vmem:[#allocation6 + $0xb8] sm:$0xff]
    %v85 = vld [vmem:[#allocation6 + $0xc0] sm:$0xff]
    %v86 = vld [vmem:[#allocation6 + $0xc8] sm:$0xff]
    %v87 = vld [vmem:[#allocation6 + $0xd0] sm:$0xff]
    %v88 = vld [vmem:[#allocation6 + $0xd8] sm:$0xff]
    %v89 = vld [vmem:[#allocation6 + $0xe0] sm:$0xff]
    %v90 = vld [vmem:[#allocation6 + $0xe8] sm:$0xff]
    %v91 = vld [vmem:[#allocation6 + $0xf0] sm:$0xff]
    %v92 = vld [vmem:[#allocation6 + $0xf8] sm:$0xff]
    %v93 = vld [vmem:[#allocation8] sm:$0xff]
    %v94 = vld [vmem:[#allocation8 + $0x8] sm:$0xff]
    %v95 = vld [vmem:[#allocation8 + $0x10] sm:$0xff]
    %v96 = vld [vmem:[#allocation8 + $0x18] sm:$0xff]
    %v97 = vld [vmem:[#allocation8 + $0x20] sm:$0xff]
    %v98 = vld [vmem:[#allocation8 + $0x28] sm:$0xff]
    %v99 = vld [vmem:[#allocation8 + $0x30] sm:$0xff]
    %v100 = vld [vmem:[#allocation8 + $0x38] sm:$0xff]
    %v101 = vld [vmem:[#allocation8 + $0x40] sm:$0xff]
    %v102 = vld [vmem:[#allocation8 + $0x48] sm:$0xff]
    %v103 = vld [vmem:[#allocation8 + $0x50] sm:$0xff]
    %v104 = vld [vmem:[#allocation8 + $0x58] sm:$0xff]
    %v105 = vld [vmem:[#allocation8 + $0x60] sm:$0xff]
    %v106 = vld [vmem:[#allocation8 + $0x68] sm:$0xff]
    %v107 = vld [vmem:[#allocation8 + $0x70] sm:$0xff]
    %v108 = vld [vmem:[#allocation8 + $0x78] sm:$0xff]
    %v109 = vld [vmem:[#allocation2] sm:$0xff]
    %v110 = vld [vmem:[#allocation3] sm:$0xff]
    %v111 = vld [vmem:[#allocation3 + $0x8] sm:$0xff]
    %v112 = vld [vmem:[#allocation3 + $0x10] sm:$0xff]
    %113 = vmatprep.subr.mxu0 %v62
    %114 = vmatpush1.msra.mxu0 %v61
    %115 = vmatprep.subr.mxu0 %v64
    %116 = vmatpush1.msra.mxu0 %v63
    %117 = vmatprep.subr.mxu0 %v66
    %118 = vmatpush1.msra.mxu0 %v65
    %119 = vmatprep.subr.mxu0 %v68
    %120 = vmatpush1.msra.mxu0 %v67
    %121 = vmatprep.subr.mxu0 %v70
    %122 = vmatpush1.msra.mxu0 %v69
    %123 = vmatprep.subr.mxu0 %v72
    %124 = vmatpush1.msra.mxu0 %v71
    %125 = vmatprep.subr.mxu0 %v74
    %126 = vmatpush1.msra.mxu0 %v73
    %127 = vmatprep.subr.mxu0 %v76
    %128 = vmatpush1.msra.mxu0 %v75
    %129 = vmatprep.subr.mxu0 %v78
    %130 = vmatpush1.msra.mxu0 %v77
    %131 = vmatprep.subr.mxu0 %v80
    %132 = vmatpush1.msra.mxu0 %v79
    %133 = vmatprep.subr.mxu0 %v82
    %134 = vmatpush1.msra.mxu0 %v81
    %135 = vmatprep.subr.mxu0 %v84
    %136 = vmatpush1.msra.mxu0 %v83
    %137 = vmatprep.subr.mxu0 %v86
    %138 = vmatpush1.msra.mxu0 %v85
    %139 = vmatprep.subr.mxu0 %v88
    %140 = vmatpush1.msra.mxu0 %v87
    %141 = vmatprep.subr.mxu0 %v90
    %142 = vmatpush1.msra.mxu0 %v89
    %143 = vmatprep.subr.mxu0 %v92
    %144 = vmatpush1.msra.mxu0 %v91
    %145 = vmatprep.subr.mxu0 0.0
    %146 = vmatpush1.msra.mxu0 0.0
    %147 = vmatprep.subr.mxu0 0.0
    %148 = vmatpush1.msra.mxu0 0.0
    %149 = vmatprep.subr.mxu0 0.0
    %150 = vmatpush1.msra.mxu0 0.0
    %151 = vmatprep.subr.mxu0 0.0
    %152 = vmatpush1.msra.mxu0 0.0
    %153 = vmatprep.subr.mxu0 0.0
    %154 = vmatpush1.msra.mxu0 0.0
    %155 = vmatprep.subr.mxu0 0.0
    %156 = vmatpush1.msra.mxu0 0.0
    %157 = vmatprep.subr.mxu0 0.0
    %158 = vmatpush1.msra.mxu0 0.0
    %159 = vmatprep.subr.mxu0 0.0
    %160 = vmatpush1.msra.mxu0 0.0
    %161 = vmatprep.subr.mxu0 0.0
    %162 = vmatpush1.msra.mxu0 0.0
    %163 = vmatprep.subr.mxu0 0.0
    %164 = vmatpush1.msra.mxu0 0.0
    %165 = vmatprep.subr.mxu0 0.0
    %166 = vmatpush1.msra.mxu0 0.0
    %167 = vmatprep.subr.mxu0 0.0
    %168 = vmatpush1.msra.mxu0 0.0
    %169 = vmatprep.subr.mxu0 0.0
    %170 = vmatpush1.msra.mxu0 0.0
    %171 = vmatprep.subr.mxu0 0.0
    %172 = vmatpush1.msra.mxu0 0.0
    %173 = vmatprep.subr.mxu0 0.0
    %174 = vmatpush1.msra.mxu0 0.0
    %175 = vmatprep.subr.mxu0 0.0
    %176 = vmatpush1.msra.mxu0 0.0
    %177 = vmatprep.mubr.f32.mxu0 0.0
    %178 = vmatmul.mubr.f32.gmra.mrb[0].mxu0 %v109
    %v179 = vpop.f32.mrb[0].mxu0
    %v180 = vadd.f32 0.0, %v179
    %v181 = vpop.f32.mrb[0].mxu0
    %v182 = vadd.f32 0.0, %v181
    %183 = vdwg.mxu0
    %v184 = vadd.f32 %v110, %v180
    %v185 = vadd.f32 %v111, %v182
    %v186 = vxor.u32 %v184, 2147483648
    %v187 = vxor.u32 %v185, 2147483648
    %v188 = vmul.f32 %v186, 1.442695
    %v189 = vpow.pop %v188
    %v190 = vmul.f32 %v187, 1.442695
    %v191 = vpow.pop %v190
    %v192 = vadd.f32 %v189, 1.0
    %v193 = vadd.f32 %v191, 1.0
    %v194 = vrcp.pop %v192
    %v195 = vmul.f32 1.0, %v194
    %v196 = vrcp.pop %v193
    %v197 = vmul.f32 1.0, %v196
    %v198 = vmul.f32 %v197, %v109
    %199 = vmatprep.subr.mxu0 0.0
    %200 = vmatpush1.msra.mxu0 %v93
    %201 = vmatprep.subr.mxu0 0.0
    %202 = vmatpush1.msra.mxu0 %v94
    %203 = vmatprep.subr.mxu0 0.0
    %204 = vmatpush1.msra.mxu0 %v95
    %205 = vmatprep.subr.mxu0 0.0
    %206 = vmatpush1.msra.mxu0 %v96
    %207 = vmatprep.subr.mxu0 0.0
    %208 = vmatpush1.msra.mxu0 %v97
    %209 = vmatprep.subr.mxu0 0.0
    %210 = vmatpush1.msra.mxu0 %v98
    %211 = vmatprep.subr.mxu0 0.0
    %212 = vmatpush1.msra.mxu0 %v99
    %213 = vmatprep.subr.mxu0 0.0
    %214 = vmatpush1.msra.mxu0 %v100
    %215 = vmatprep.subr.mxu0 0.0
    %216 = vmatpush1.msra.mxu0 %v101
    %217 = vmatprep.subr.mxu0 0.0
    %218 = vmatpush1.msra.mxu0 %v102
    %219 = vmatprep.subr.mxu0 0.0
    %220 = vmatpush1.msra.mxu0 %v103
    %221 = vmatprep.subr.mxu0 0.0
    %222 = vmatpush1.msra.mxu0 %v104
    %223 = vmatprep.subr.mxu0 0.0
    %224 = vmatpush1.msra.mxu0 %v105
    %225 = vmatprep.subr.mxu0 0.0
    %226 = vmatpush1.msra.mxu0 %v106
    %227 = vmatprep.subr.mxu0 0.0
    %228 = vmatpush1.msra.mxu0 %v107
    %229 = vmatprep.subr.mxu0 0.0
    %230 = vmatpush1.msra.mxu0 %v108
    %231 = vmatprep.subr.mxu0 0.0
    %232 = vmatpush1.msra.mxu0 0.0
    %233 = vmatprep.subr.mxu0 0.0
    %234 = vmatpush1.msra.mxu0 0.0
    %235 = vmatprep.subr.mxu0 0.0
    %236 = vmatpush1.msra.mxu0 0.0
    %237 = vmatprep.subr.mxu0 0.0
    %238 = vmatpush1.msra.mxu0 0.0
    %239 = vmatprep.subr.mxu0 0.0
    %240 = vmatpush1.msra.mxu0 0.0
    %241 = vmatprep.subr.mxu0 0.0
    %242 = vmatpush1.msra.mxu0 0.0
    %243 = vmatprep.subr.mxu0 0.0
    %244 = vmatpush1.msra.mxu0 0.0
    %245 = vmatprep.subr.mxu0 0.0
    %246 = vmatpush1.msra.mxu0 0.0
    %247 = vmatprep.subr.mxu0 0.0
    %248 = vmatpush1.msra.mxu0 0.0
    %249 = vmatprep.subr.mxu0 0.0
    %250 = vmatpush1.msra.mxu0 0.0
    %251 = vmatprep.subr.mxu0 0.0
    %252 = vmatpush1.msra.mxu0 0.0
    %253 = vmatprep.subr.mxu0 0.0
    %254 = vmatpush1.msra.mxu0 0.0
    %255 = vmatprep.subr.mxu0 0.0
    %256 = vmatpush1.msra.mxu0 0.0
    %257 = vmatprep.subr.mxu0 0.0
    %258 = vmatpush1.msra.mxu0 0.0
    %259 = vmatprep.subr.mxu0 0.0
    %260 = vmatpush1.msra.mxu0 0.0
    %261 = vmatprep.subr.mxu0 0.0
    %262 = vmatpush1.msra.mxu0 0.0
    %263 = vmatprep.mubr.f32.mxu0 0.0
    %264 = vmatmul.mubr.f32.gmra.mrb[0].mxu0 %v198
    %v265 = vpop.f32.mrb[0].mxu0
    %v266 = vadd.f32 0.0, %v265
    %v267 = vpop.f32.mrb[0].mxu0
    %268 = vdwg.mxu0
    %v269 = vadd.f32 %v112, %v266
    %v270 = vtanh.pop %v269
    %v271 = vmul.f32 %v195, %v109
    %v272 = vsub.f32 1.0, %v195
    %v273 = vmul.f32 %v272, %v270
    %v274 = vadd.f32 %v271, %v273
    %s275 = scalar_lea.vmem [#allocation3], 24
    %v276 = vld [vmem:[%s275] sm:$0xff]
    %v277 = vld [vmem:[%s275 + $0x8] sm:$0xff]
    %v278 = vld [vmem:[%s275 + $0x10] sm:$0xff]
    %279 = vmatprep.subr.mxu0 %v62
    %280 = vmatpush1.msra.mxu0 %v61
    %281 = vmatprep.subr.mxu0 %v64
    %282 = vmatpush1.msra.mxu0 %v63
    %283 = vmatprep.subr.mxu0 %v66
    %284 = vmatpush1.msra.mxu0 %v65
    %285 = vmatprep.subr.mxu0 %v68
    %286 = vmatpush1.msra.mxu0 %v67
    %287 = vmatprep.subr.mxu0 %v70
    %288 = vmatpush1.msra.mxu0 %v69
    %289 = vmatprep.subr.mxu0 %v72
    %290 = vmatpush1.msra.mxu0 %v71
    %291 = vmatprep.subr.mxu0 %v74
    %292 = vmatpush1.msra.mxu0 %v73
    %293 = vmatprep.subr.mxu0 %v76
    %294 = vmatpush1.msra.mxu0 %v75
    %295 = vmatprep.subr.mxu0 %v78
    %296 = vmatpush1.msra.mxu0 %v77
    %297 = vmatprep.subr.mxu0 %v80
    %298 = vmatpush1.msra.mxu0 %v79
    %299 = vmatprep.subr.mxu0 %v82
    %300 = vmatpush1.msra.mxu0 %v81
    %301 = vmatprep.subr.mxu0 %v84
    %302 = vmatpush1.msra.mxu0 %v83
    %303 = vmatprep.subr.mxu0 %v86
    %304 = vmatpush1.msra.mxu0 %v85
    %305 = vmatprep.subr.mxu0 %v88
    %306 = vmatpush1.msra.mxu0 %v87
    %307 = vmatprep.subr.mxu0 %v90
    %308 = vmatpush1.msra.mxu0 %v89
    %309 = vmatprep.subr.mxu0 %v92
    %310 = vmatpush1.msra.mxu0 %v91
    %311 = vmatprep.subr.mxu0 0.0
    %312 = vmatpush1.msra.mxu0 0.0
    %313 = vmatprep.subr.mxu0 0.0
    %314 = vmatpush1.msra.mxu0 0.0
    %315 = vmatprep.subr.mxu0 0.0
    %316 = vmatpush1.msra.mxu0 0.0
    %317 = vmatprep.subr.mxu0 0.0
    %318 = vmatpush1.msra.mxu0 0.0
    %319 = vmatprep.subr.mxu0 0.0
    %320 = vmatpush1.msra.mxu0 0.0
    %321 = vmatprep.subr.mxu0 0.0
    %322 = vmatpush1.msra.mxu0 0.0
    %323 = vmatprep.subr.mxu0 0.0
    %324 = vmatpush1.msra.mxu0 0.0
    %325 = vmatprep.subr.mxu0 0.0
    %326 = vmatpush1.msra.mxu0 0.0
    %327 = vmatprep.subr.mxu0 0.0
    %328 = vmatpush1.msra.mxu0 0.0
    %329 = vmatprep.subr.mxu0 0.0
    %330 = vmatpush1.msra.mxu0 0.0
    %331 = vmatprep.subr.mxu0 0.0
    %332 = vmatpush1.msra.mxu0 0.0
    %333 = vmatprep.subr.mxu0 0.0
    %334 = vmatpush1.msra.mxu0 0.0
    %335 = vmatprep.subr.mxu0 0.0
    %336 = vmatpush1.msra.mxu0 0.0
    %337 = vmatprep.subr.mxu0 0.0
    %338 = vmatpush1.msra.mxu0 0.0
    %339 = vmatprep.subr.mxu0 0.0
    %340 = vmatpush1.msra.mxu0 0.0
    %341 = vmatprep.subr.mxu0 0.0
    %342 = vmatpush1.msra.mxu0 0.0
    %343 = vmatprep.mubr.f32.mxu0 0.0
    %344 = vmatmul.mubr.f32.gmra.mrb[0].mxu0 %v274
    %v345 = vpop.f32.mrb[0].mxu0
    %v346 = vadd.f32 0.0, %v345
    %v347 = vpop.f32.mrb[0].mxu0
    %v348 = vadd.f32 0.0, %v347
    %349 = vdwg.mxu0
    %v350 = vadd.f32 %v276, %v346
    %v351 = vadd.f32 %v277, %v348
    %v352 = vxor.u32 %v350, 2147483648
    %v353 = vxor.u32 %v351, 2147483648
    %v354 = vmul.f32 %v352, 1.442695
    %v355 = vpow.pop %v354
    %v356 = vmul.f32 %v353, 1.442695
    %v357 = vpow.pop %v356
    %v358 = vadd.f32 %v355, 1.0
    %v359 = vadd.f32 %v357, 1.0
    %v360 = vrcp.pop %v358
    %v361 = vmul.f32 1.0, %v360
    %v362 = vrcp.pop %v359
    %v363 = vmul.f32 1.0, %v362
    %v364 = vmul.f32 %v363, %v274
    %365 = vmatprep.subr.mxu0 0.0
    %366 = vmatpush1.msra.mxu0 %v93
    %367 = vmatprep.subr.mxu0 0.0
    %368 = vmatpush1.msra.mxu0 %v94
    %369 = vmatprep.subr.mxu0 0.0
    %370 = vmatpush1.msra.mxu0 %v95
    %371 = vmatprep.subr.mxu0 0.0
    %372 = vmatpush1.msra.mxu0 %v96
    %373 = vmatprep.subr.mxu0 0.0
    %374 = vmatpush1.msra.mxu0 %v97
    %375 = vmatprep.subr.mxu0 0.0
    %376 = vmatpush1.msra.mxu0 %v98
    %377 = vmatprep.subr.mxu0 0.0
    %378 = vmatpush1.msra.mxu0 %v99
    %379 = vmatprep.subr.mxu0 0.0
    %380 = vmatpush1.msra.mxu0 %v100
    %381 = vmatprep.subr.mxu0 0.0
    %382 = vmatpush1.msra.mxu0 %v101
    %383 = vmatprep.subr.mxu0 0.0
    %384 = vmatpush1.msra.mxu0 %v102
    %385 = vmatprep.subr.mxu0 0.0
    %386 = vmatpush1.msra.mxu0 %v103
    %387 = vmatprep.subr.mxu0 0.0
    %388 = vmatpush1.msra.mxu0 %v104
    %389 = vmatprep.subr.mxu0 0.0
    %390 = vmatpush1.msra.mxu0 %v105
    %391 = vmatprep.subr.mxu0 0.0
    %392 = vmatpush1.msra.mxu0 %v106
    %393 = vmatprep.subr.mxu0 0.0
    %394 = vmatpush1.msra.mxu0 %v107
    %395 = vmatprep.subr.mxu0 0.0
    %396 = vmatpush1.msra.mxu0 %v108
    %397 = vmatprep.subr.mxu0 0.0
    %398 = vmatpush1.msra.mxu0 0.0
    %399 = vmatprep.subr.mxu0 0.0
    %400 = vmatpush1.msra.mxu0 0.0
    %401 = vmatprep.subr.mxu0 0.0
    %402 = vmatpush1.msra.mxu0 0.0
    %403 = vmatprep.subr.mxu0 0.0
    %404 = vmatpush1.msra.mxu0 0.0
    %405 = vmatprep.subr.mxu0 0.0
    %406 = vmatpush1.msra.mxu0 0.0
    %407 = vmatprep.subr.mxu0 0.0
    %408 = vmatpush1.msra.mxu0 0.0
    %409 = vmatprep.subr.mxu0 0.0
    %410 = vmatpush1.msra.mxu0 0.0
    %411 = vmatprep.subr.mxu0 0.0
    %412 = vmatpush1.msra.mxu0 0.0
    %413 = vmatprep.subr.mxu0 0.0
    %414 = vmatpush1.msra.mxu0 0.0
    %415 = vmatprep.subr.mxu0 0.0
    %416 = vmatpush1.msra.mxu0 0.0
    %417 = vmatprep.subr.mxu0 0.0
    %418 = vmatpush1.msra.mxu0 0.0
    %419 = vmatprep.subr.mxu0 0.0
    %420 = vmatpush1.msra.mxu0 0.0
    %421 = vmatprep.subr.mxu0 0.0
    %422 = vmatpush1.msra.mxu0 0.0
    %423 = vmatprep.subr.mxu0 0.0
    %424 = vmatpush1.msra.mxu0 0.0
    %425 = vmatprep.subr.mxu0 0.0
    %426 = vmatpush1.msra.mxu0 0.0
    %427 = vmatprep.subr.mxu0 0.0
    %428 = vmatpush1.msra.mxu0 0.0
    %429 = vmatprep.mubr.f32.mxu0 0.0
    %430 = vmatmul.mubr.f32.gmra.mrb[0].mxu0 %v364
    %v431 = vpop.f32.mrb[0].mxu0
    %v432 = vadd.f32 0.0, %v431
    %v433 = vpop.f32.mrb[0].mxu0
    %434 = vdwg.mxu0
    %v435 = vadd.f32 %v278, %v432
    %v436 = vtanh.pop %v435
    %v437 = vmul.f32 %v361, %v274
    %v438 = vsub.f32 1.0, %v361
    %v439 = vmul.f32 %v438, %v436
    %v440 = vadd.f32 %v437, %v439
    %s441 = scalar_lea.vmem [#allocation3], 48
    %v442 = vld [vmem:[%s441] sm:$0xff]
    %v443 = vld [vmem:[%s441 + $0x8] sm:$0xff]
    %v444 = vld [vmem:[%s441 + $0x10] sm:$0xff]
    %445 = vmatprep.subr.mxu0 %v62
    %446 = vmatpush1.msra.mxu0 %v61
    %447 = vmatprep.subr.mxu0 %v64
    %448 = vmatpush1.msra.mxu0 %v63
    %449 = vmatprep.subr.mxu0 %v66
    %450 = vmatpush1.msra.mxu0 %v65
    %451 = vmatprep.subr.mxu0 %v68
    %452 = vmatpush1.msra.mxu0 %v67
    %453 = vmatprep.subr.mxu0 %v70
    %454 = vmatpush1.msra.mxu0 %v69
    %455 = vmatprep.subr.mxu0 %v72
    %456 = vmatpush1.msra.mxu0 %v71
    %457 = vmatprep.subr.mxu0 %v74
    %458 = vmatpush1.msra.mxu0 %v73
    %459 = vmatprep.subr.mxu0 %v76
    %460 = vmatpush1.msra.mxu0 %v75
    %461 = vmatprep.subr.mxu0 %v78
    %462 = vmatpush1.msra.mxu0 %v77
    %463 = vmatprep.subr.mxu0 %v80
    %464 = vmatpush1.msra.mxu0 %v79
    %465 = vmatprep.subr.mxu0 %v82
    %466 = vmatpush1.msra.mxu0 %v81
    %467 = vmatprep.subr.mxu0 %v84
    %468 = vmatpush1.msra.mxu0 %v83
    %469 = vmatprep.subr.mxu0 %v86
    %470 = vmatpush1.msra.mxu0 %v85
    %471 = vmatprep.subr.mxu0 %v88
    %472 = vmatpush1.msra.mxu0 %v87
    %473 = vmatprep.subr.mxu0 %v90
    %474 = vmatpush1.msra.mxu0 %v89
    %475 = vmatprep.subr.mxu0 %v92
    %476 = vmatpush1.msra.mxu0 %v91
    %477 = vmatprep.subr.mxu0 0.0
    %478 = vmatpush1.msra.mxu0 0.0
    %479 = vmatprep.subr.mxu0 0.0
    %480 = vmatpush1.msra.mxu0 0.0
    %481 = vmatprep.subr.mxu0 0.0
    %482 = vmatpush1.msra.mxu0 0.0
    %483 = vmatprep.subr.mxu0 0.0
    %484 = vmatpush1.msra.mxu0 0.0
    %485 = vmatprep.subr.mxu0 0.0
    %486 = vmatpush1.msra.mxu0 0.0
    %487 = vmatprep.subr.mxu0 0.0
    %488 = vmatpush1.msra.mxu0 0.0
    %489 = vmatprep.subr.mxu0 0.0
    %490 = vmatpush1.msra.mxu0 0.0
    %491 = vmatprep.subr.mxu0 0.0
    %492 = vmatpush1.msra.mxu0 0.0
    %493 = vmatprep.subr.mxu0 0.0
    %494 = vmatpush1.msra.mxu0 0.0
    %495 = vmatprep.subr.mxu0 0.0
    %496 = vmatpush1.msra.mxu0 0.0
    %497 = vmatprep.subr.mxu0 0.0
    %498 = vmatpush1.msra.mxu0 0.0
    %499 = vmatprep.subr.mxu0 0.0
    %500 = vmatpush1.msra.mxu0 0.0
    %501 = vmatprep.subr.mxu0 0.0
    %502 = vmatpush1.msra.mxu0 0.0
    %503 = vmatprep.subr.mxu0 0.0
    %504 = vmatpush1.msra.mxu0 0.0
    %505 = vmatprep.subr.mxu0 0.0
    %506 = vmatpush1.msra.mxu0 0.0
    %507 = vmatprep.subr.mxu0 0.0
    %508 = vmatpush1.msra.mxu0 0.0
    %509 = vmatprep.mubr.f32.mxu0 0.0
    %510 = vmatmul.mubr.f32.gmra.mrb[0].mxu0 %v440
    %v511 = vpop.f32.mrb[0].mxu0
    %v512 = vadd.f32 0.0, %v511
    %v513 = vpop.f32.mrb[0].mxu0
    %v514 = vadd.f32 0.0, %v513
    %515 = vdwg.mxu0
    %v516 = vadd.f32 %v442, %v512
    %v517 = vadd.f32 %v443, %v514
    %v518 = vxor.u32 %v516, 2147483648
    %v519 = vxor.u32 %v517, 2147483648
    %v520 = vmul.f32 %v518, 1.442695
    %v521 = vpow.pop %v520
    %v522 = vmul.f32 %v519, 1.442695
    %v523 = vpow.pop %v522
    %v524 = vadd.f32 %v521, 1.0
    %v525 = vadd.f32 %v523, 1.0
    %v526 = vrcp.pop %v524
    %v527 = vmul.f32 1.0, %v526
    %v528 = vrcp.pop %v525
    %v529 = vmul.f32 1.0, %v528
    %v530 = vmul.f32 %v529, %v440
    %531 = vmatprep.subr.mxu0 0.0
    %532 = vmatpush1.msra.mxu0 %v93
    %533 = vmatprep.subr.mxu0 0.0
    %534 = vmatpush1.msra.mxu0 %v94
    %535 = vmatprep.subr.mxu0 0.0
    %536 = vmatpush1.msra.mxu0 %v95
    %537 = vmatprep.subr.mxu0 0.0
    %538 = vmatpush1.msra.mxu0 %v96
    %539 = vmatprep.subr.mxu0 0.0
    %540 = vmatpush1.msra.mxu0 %v97
    %541 = vmatprep.subr.mxu0 0.0
    %542 = vmatpush1.msra.mxu0 %v98
    %543 = vmatprep.subr.mxu0 0.0
    %544 = vmatpush1.msra.mxu0 %v99
    %545 = vmatprep.subr.mxu0 0.0
    %546 = vmatpush1.msra.mxu0 %v100
    %547 = vmatprep.subr.mxu0 0.0
    %548 = vmatpush1.msra.mxu0 %v101
    %549 = vmatprep.subr.mxu0 0.0
    %550 = vmatpush1.msra.mxu0 %v102
    %551 = vmatprep.subr.mxu0 0.0
    %552 = vmatpush1.msra.mxu0 %v103
    %553 = vmatprep.subr.mxu0 0.0
    %554 = vmatpush1.msra.mxu0 %v104
    %555 = vmatprep.subr.mxu0 0.0
    %556 = vmatpush1.msra.mxu0 %v105
    %557 = vmatprep.subr.mxu0 0.0
    %558 = vmatpush1.msra.mxu0 %v106
    %559 = vmatprep.subr.mxu0 0.0
    %560 = vmatpush1.msra.mxu0 %v107
    %561 = vmatprep.subr.mxu0 0.0
    %562 = vmatpush1.msra.mxu0 %v108
    %563 = vmatprep.subr.mxu0 0.0
    %564 = vmatpush1.msra.mxu0 0.0
    %565 = vmatprep.subr.mxu0 0.0
    %566 = vmatpush1.msra.mxu0 0.0
    %567 = vmatprep.subr.mxu0 0.0
    %568 = vmatpush1.msra.mxu0 0.0
    %569 = vmatprep.subr.mxu0 0.0
    %570 = vmatpush1.msra.mxu0 0.0
    %571 = vmatprep.subr.mxu0 0.0
    %572 = vmatpush1.msra.mxu0 0.0
    %573 = vmatprep.subr.mxu0 0.0
    %574 = vmatpush1.msra.mxu0 0.0
    %575 = vmatprep.subr.mxu0 0.0
    %576 = vmatpush1.msra.mxu0 0.0
    %577 = vmatprep.subr.mxu0 0.0
    %578 = vmatpush1.msra.mxu0 0.0
    %579 = vmatprep.subr.mxu0 0.0
    %580 = vmatpush1.msra.mxu0 0.0
    %581 = vmatprep.subr.mxu0 0.0
    %582 = vmatpush1.msra.mxu0 0.0
    %583 = vmatprep.subr.mxu0 0.0
    %584 = vmatpush1.msra.mxu0 0.0
    %585 = vmatprep.subr.mxu0 0.0
    %586 = vmatpush1.msra.mxu0 0.0
    %587 = vmatprep.subr.mxu0 0.0
    %588 = vmatpush1.msra.mxu0 0.0
    %589 = vmatprep.subr.mxu0 0.0
    %590 = vmatpush1.msra.mxu0 0.0
    %591 = vmatprep.subr.mxu0 0.0
    %592 = vmatpush1.msra.mxu0 0.0
    %593 = vmatprep.subr.mxu0 0.0
    %594 = vmatpush1.msra.mxu0 0.0
    %595 = vmatprep.mubr.f32.mxu0 0.0
    %596 = vmatmul.mubr.f32.gmra.mrb[0].mxu0 %v530
    %v597 = vpop.f32.mrb[0].mxu0
    %v598 = vadd.f32 0.0, %v597
    %v599 = vpop.f32.mrb[0].mxu0
    %600 = vdwg.mxu0
    %v601 = vadd.f32 %v444, %v598
    %v602 = vtanh.pop %v601
    %v603 = vmul.f32 %v527, %v440
    %v604 = vsub.f32 1.0, %v527
    %v605 = vmul.f32 %v604, %v602
    %v606 = vadd.f32 %v603, %v605
    %s607 = scalar_lea.vmem [#allocation3], 72
    %v608 = vld [vmem:[%s607] sm:$0xff]
    %v609 = vld [vmem:[%s607 + $0x8] sm:$0xff]
    %v610 = vld [vmem:[%s607 + $0x10] sm:$0xff]
    %611 = vmatprep.subr.mxu0 %v62
    %612 = vmatpush1.msra.mxu0 %v61
    %613 = vmatprep.subr.mxu0 %v64
    %614 = vmatpush1.msra.mxu0 %v63
    %615 = vmatprep.subr.mxu0 %v66
    %616 = vmatpush1.msra.mxu0 %v65
    %617 = vmatprep.subr.mxu0 %v68
    %618 = vmatpush1.msra.mxu0 %v67
    %619 = vmatprep.subr.mxu0 %v70
    %620 = vmatpush1.msra.mxu0 %v69
    %621 = vmatprep.subr.mxu0 %v72
    %622 = vmatpush1.msra.mxu0 %v71
    %623 = vmatprep.subr.mxu0 %v74
    %624 = vmatpush1.msra.mxu0 %v73
    %625 = vmatprep.subr.mxu0 %v76
    %626 = vmatpush1.msra.mxu0 %v75
    %627 = vmatprep.subr.mxu0 %v78
    %628 = vmatpush1.msra.mxu0 %v77
    %629 = vmatprep.subr.mxu0 %v80
    %630 = vmatpush1.msra.mxu0 %v79
    %631 = vmatprep.subr.mxu0 %v82
    %632 = vmatpush1.msra.mxu0 %v81
    %633 = vmatprep.subr.mxu0 %v84
    %634 = vmatpush1.msra.mxu0 %v83
    %635 = vmatprep.subr.mxu0 %v86
    %636 = vmatpush1.msra.mxu0 %v85
    %637 = vmatprep.subr.mxu0 %v88
    %638 = vmatpush1.msra.mxu0 %v87
    %639 = vmatprep.subr.mxu0 %v90
    %640 = vmatpush1.msra.mxu0 %v89
    %641 = vmatprep.subr.mxu0 %v92
    %642 = vmatpush1.msra.mxu0 %v91
    %643 = vmatprep.subr.mxu0 0.0
    %644 = vmatpush1.msra.mxu0 0.0
    %645 = vmatprep.subr.mxu0 0.0
    %646 = vmatpush1.msra.mxu0 0.0
    %647 = vmatprep.subr.mxu0 0.0
    %648 = vmatpush1.msra.mxu0 0.0
    %649 = vmatprep.subr.mxu0 0.0
    %650 = vmatpush1.msra.mxu0 0.0
    %651 = vmatprep.subr.mxu0 0.0
    %652 = vmatpush1.msra.mxu0 0.0
    %653 = vmatprep.subr.mxu0 0.0
    %654 = vmatpush1.msra.mxu0 0.0
    %655 = vmatprep.subr.mxu0 0.0
    %656 = vmatpush1.msra.mxu0 0.0
    %657 = vmatprep.subr.mxu0 0.0
    %658 = vmatpush1.msra.mxu0 0.0
    %659 = vmatprep.subr.mxu0 0.0
    %660 = vmatpush1.msra.mxu0 0.0
    %661 = vmatprep.subr.mxu0 0.0
    %662 = vmatpush1.msra.mxu0 0.0
    %663 = vmatprep.subr.mxu0 0.0
    %664 = vmatpush1.msra.mxu0 0.0
    %665 = vmatprep.subr.mxu0 0.0
    %666 = vmatpush1.msra.mxu0 0.0
    %667 = vmatprep.subr.mxu0 0.0
    %668 = vmatpush1.msra.mxu0 0.0
    %669 = vmatprep.subr.mxu0 0.0
    %670 = vmatpush1.msra.mxu0 0.0
    %671 = vmatprep.subr.mxu0 0.0
    %672 = vmatpush1.msra.mxu0 0.0
    %673 = vmatprep.subr.mxu0 0.0
    %674 = vmatpush1.msra.mxu0 0.0
    %675 = vmatprep.mubr.f32.mxu0 0.0
    %676 = vmatmul.mubr.f32.gmra.mrb[0].mxu0 %v606
    %v677 = vpop.f32.mrb[0].mxu0
    %v678 = vadd.f32 0.0, %v677
    %v679 = vpop.f32.mrb[0].mxu0
    %v680 = vadd.f32 0.0, %v679
    %681 = vdwg.mxu0
    %v682 = vadd.f32 %v608, %v678
    %v683 = vadd.f32 %v609, %v680
    %v684 = vxor.u32 %v682, 2147483648
    %v685 = vxor.u32 %v683, 2147483648
    %v686 = vmul.f32 %v684, 1.442695
    %v687 = vpow.pop %v686
    %v688 = vmul.f32 %v685, 1.442695
    %v689 = vpow.pop %v688
    %v690 = vadd.f32 %v687, 1.0
    %v691 = vadd.f32 %v689, 1.0
    %v692 = vrcp.pop %v690
    %v693 = vmul.f32 1.0, %v692
    %v694 = vrcp.pop %v691
    %v695 = vmul.f32 1.0, %v694
    %v696 = vmul.f32 %v695, %v606
    %697 = vmatprep.subr.mxu0 0.0
    %698 = vmatpush1.msra.mxu0 %v93
    %699 = vmatprep.subr.mxu0 0.0
    %700 = vmatpush1.msra.mxu0 %v94
    %701 = vmatprep.subr.mxu0 0.0
    %702 = vmatpush1.msra.mxu0 %v95
    %703 = vmatprep.subr.mxu0 0.0
    %704 = vmatpush1.msra.mxu0 %v96
    %705 = vmatprep.subr.mxu0 0.0
    %706 = vmatpush1.msra.mxu0 %v97
    %707 = vmatprep.subr.mxu0 0.0
    %708 = vmatpush1.msra.mxu0 %v98
    %709 = vmatprep.subr.mxu0 0.0
    %710 = vmatpush1.msra.mxu0 %v99
    %711 = vmatprep.subr.mxu0 0.0
    %712 = vmatpush1.msra.mxu0 %v100
    %713 = vmatprep.subr.mxu0 0.0
    %714 = vmatpush1.msra.mxu0 %v101
    %715 = vmatprep.subr.mxu0 0.0
    %716 = vmatpush1.msra.mxu0 %v102
    %717 = vmatprep.subr.mxu0 0.0
    %718 = vmatpush1.msra.mxu0 %v103
    %719 = vmatprep.subr.mxu0 0.0
    %720 = vmatpush1.msra.mxu0 %v104
    %721 = vmatprep.subr.mxu0 0.0
    %722 = vmatpush1.msra.mxu0 %v105
    %723 = vmatprep.subr.mxu0 0.0
    %724 = vmatpush1.msra.mxu0 %v106
    %725 = vmatprep.subr.mxu0 0.0
    %726 = vmatpush1.msra.mxu0 %v107
    %727 = vmatprep.subr.mxu0 0.0
    %728 = vmatpush1.msra.mxu0 %v108
    %729 = vmatprep.subr.mxu0 0.0
    %730 = vmatpush1.msra.mxu0 0.0
    %731 = vmatprep.subr.mxu0 0.0
    %732 = vmatpush1.msra.mxu0 0.0
    %733 = vmatprep.subr.mxu0 0.0
    %734 = vmatpush1.msra.mxu0 0.0
    %735 = vmatprep.subr.mxu0 0.0
    %736 = vmatpush1.msra.mxu0 0.0
    %737 = vmatprep.subr.mxu0 0.0
    %738 = vmatpush1.msra.mxu0 0.0
    %739 = vmatprep.subr.mxu0 0.0
    %740 = vmatpush1.msra.mxu0 0.0
    %741 = vmatprep.subr.mxu0 0.0
    %742 = vmatpush1.msra.mxu0 0.0
    %743 = vmatprep.subr.mxu0 0.0
    %744 = vmatpush1.msra.mxu0 0.0
    %745 = vmatprep.subr.mxu0 0.0
    %746 = vmatpush1.msra.mxu0 0.0
    %747 = vmatprep.subr.mxu0 0.0
    %748 = vmatpush1.msra.mxu0 0.0
    %749 = vmatprep.subr.mxu0 0.0
    %750 = vmatpush1.msra.mxu0 0.0
    %751 = vmatprep.subr.mxu0 0.0
    %752 = vmatpush1.msra.mxu0 0.0
    %753 = vmatprep.subr.mxu0 0.0
    %754 = vmatpush1.msra.mxu0 0.0
    %755 = vmatprep.subr.mxu0 0.0
    %756 = vmatpush1.msra.mxu0 0.0
    %757 = vmatprep.subr.mxu0 0.0
    %758 = vmatpush1.msra.mxu0 0.0
    %759 = vmatprep.subr.mxu0 0.0
    %760 = vmatpush1.msra.mxu0 0.0
    %761 = vmatprep.mubr.f32.mxu0 0.0
    %762 = vmatmul.mubr.f32.gmra.mrb[0].mxu0 %v696
    %v763 = vpop.f32.mrb[0].mxu0
    %v764 = vadd.f32 0.0, %v763
    %v765 = vpop.f32.mrb[0].mxu0
    %766 = vdwg.mxu0
    %v767 = vadd.f32 %v610, %v764
    %v768 = vtanh.pop %v767
    %v769 = vmul.f32 %v693, %v606
    %v770 = vsub.f32 1.0, %v693
    %v771 = vmul.f32 %v770, %v768
    %v772 = vadd.f32 %v769, %v771
    %s773 = scalar_lea.vmem [#allocation3], 96
    %v774 = vld [vmem:[%s773] sm:$0xff]
    %v775 = vld [vmem:[%s773 + $0x8] sm:$0xff]
    %v776 = vld [vmem:[%s773 + $0x10] sm:$0xff]
    %777 = vmatprep.subr.mxu0 %v62
    %778 = vmatpush1.msra.mxu0 %v61
    %779 = vmatprep.subr.mxu0 %v64
    %780 = vmatpush1.msra.mxu0 %v63
    %781 = vmatprep.subr.mxu0 %v66
    %782 = vmatpush1.msra.mxu0 %v65
    %783 = vmatprep.subr.mxu0 %v68
    %784 = vmatpush1.msra.mxu0 %v67
    %785 = vmatprep.subr.mxu0 %v70
    %786 = vmatpush1.msra.mxu0 %v69
    %787 = vmatprep.subr.mxu0 %v72
    %788 = vmatpush1.msra.mxu0 %v71
    %789 = vmatprep.subr.mxu0 %v74
    %790 = vmatpush1.msra.mxu0 %v73
    %791 = vmatprep.subr.mxu0 %v76
    %792 = vmatpush1.msra.mxu0 %v75
    %793 = vmatprep.subr.mxu0 %v78
    %794 = vmatpush1.msra.mxu0 %v77
    %795 = vmatprep.subr.mxu0 %v80
    %796 = vmatpush1.msra.mxu0 %v79
    %797 = vmatprep.subr.mxu0 %v82
    %798 = vmatpush1.msra.mxu0 %v81
    %799 = vmatprep.subr.mxu0 %v84
    %800 = vmatpush1.msra.mxu0 %v83
    %801 = vmatprep.subr.mxu0 %v86
    %802 = vmatpush1.msra.mxu0 %v85
    %803 = vmatprep.subr.mxu0 %v88
    %804 = vmatpush1.msra.mxu0 %v87
    %805 = vmatprep.subr.mxu0 %v90
    %806 = vmatpush1.msra.mxu0 %v89
    %807 = vmatprep.subr.mxu0 %v92
    %808 = vmatpush1.msra.mxu0 %v91
    %809 = vmatprep.subr.mxu0 0.0
    %810 = vmatpush1.msra.mxu0 0.0
    %811 = vmatprep.subr.mxu0 0.0
    %812 = vmatpush1.msra.mxu0 0.0
    %813 = vmatprep.subr.mxu0 0.0
    %814 = vmatpush1.msra.mxu0 0.0
    %815 = vmatprep.subr.mxu0 0.0
    %816 = vmatpush1.msra.mxu0 0.0
    %817 = vmatprep.subr.mxu0 0.0
    %818 = vmatpush1.msra.mxu0 0.0
    %819 = vmatprep.subr.mxu0 0.0
    %820 = vmatpush1.msra.mxu0 0.0
    %821 = vmatprep.subr.mxu0 0.0
    %822 = vmatpush1.msra.mxu0 0.0
    %823 = vmatprep.subr.mxu0 0.0
    %824 = vmatpush1.msra.mxu0 0.0
    %825 = vmatprep.subr.mxu0 0.0
    %826 = vmatpush1.msra.mxu0 0.0
    %827 = vmatprep.subr.mxu0 0.0
    %828 = vmatpush1.msra.mxu0 0.0
    %829 = vmatprep.subr.mxu0 0.0
    %830 = vmatpush1.msra.mxu0 0.0
    %831 = vmatprep.subr.mxu0 0.0
    %832 = vmatpush1.msra.mxu0 0.0
    %833 = vmatprep.subr.mxu0 0.0
    %834 = vmatpush1.msra.mxu0 0.0
    %835 = vmatprep.subr.mxu0 0.0
    %836 = vmatpush1.msra.mxu0 0.0
    %837 = vmatprep.subr.mxu0 0.0
    %838 = vmatpush1.msra.mxu0 0.0
    %839 = vmatprep.subr.mxu0 0.0
    %840 = vmatpush1.msra.mxu0 0.0
    %841 = vmatprep.mubr.f32.mxu0 0.0
    %842 = vmatmul.mubr.f32.gmra.mrb[0].mxu0 %v772
    %v843 = vpop.f32.mrb[0].mxu0
    %v844 = vadd.f32 0.0, %v843
    %v845 = vpop.f32.mrb[0].mxu0
    %v846 = vadd.f32 0.0, %v845
    %847 = vdwg.mxu0
    %v848 = vadd.f32 %v774, %v844
    %v849 = vadd.f32 %v775, %v846
    %v850 = vxor.u32 %v848, 2147483648
    %v851 = vxor.u32 %v849, 2147483648
    %v852 = vmul.f32 %v850, 1.442695
    %v853 = vpow.pop %v852
    %v854 = vmul.f32 %v851, 1.442695
    %v855 = vpow.pop %v854
    %v856 = vadd.f32 %v853, 1.0
    %v857 = vadd.f32 %v855, 1.0
    %v858 = vrcp.pop %v856
    %v859 = vmul.f32 1.0, %v858
    %v860 = vrcp.pop %v857
    %v861 = vmul.f32 1.0, %v860
    %v862 = vmul.f32 %v861, %v772
    %863 = vmatprep.subr.mxu0 0.0
    %864 = vmatpush1.msra.mxu0 %v93
    %865 = vmatprep.subr.mxu0 0.0
    %866 = vmatpush1.msra.mxu0 %v94
    %867 = vmatprep.subr.mxu0 0.0
    %868 = vmatpush1.msra.mxu0 %v95
    %869 = vmatprep.subr.mxu0 0.0
    %870 = vmatpush1.msra.mxu0 %v96
    %871 = vmatprep.subr.mxu0 0.0
    %872 = vmatpush1.msra.mxu0 %v97
    %873 = vmatprep.subr.mxu0 0.0
    %874 = vmatpush1.msra.mxu0 %v98
    %875 = vmatprep.subr.mxu0 0.0
    %876 = vmatpush1.msra.mxu0 %v99
    %877 = vmatprep.subr.mxu0 0.0
    %878 = vmatpush1.msra.mxu0 %v100
    %879 = vmatprep.subr.mxu0 0.0
    %880 = vmatpush1.msra.mxu0 %v101
    %881 = vmatprep.subr.mxu0 0.0
    %882 = vmatpush1.msra.mxu0 %v102
    %883 = vmatprep.subr.mxu0 0.0
    %884 = vmatpush1.msra.mxu0 %v103
    %885 = vmatprep.subr.mxu0 0.0
    %886 = vmatpush1.msra.mxu0 %v104
    %887 = vmatprep.subr.mxu0 0.0
    %888 = vmatpush1.msra.mxu0 %v105
    %889 = vmatprep.subr.mxu0 0.0
    %890 = vmatpush1.msra.mxu0 %v106
    %891 = vmatprep.subr.mxu0 0.0
    %892 = vmatpush1.msra.mxu0 %v107
    %893 = vmatprep.subr.mxu0 0.0
    %894 = vmatpush1.msra.mxu0 %v108
    %895 = vmatprep.subr.mxu0 0.0
    %896 = vmatpush1.msra.mxu0 0.0
    %897 = vmatprep.subr.mxu0 0.0
    %898 = vmatpush1.msra.mxu0 0.0
    %899 = vmatprep.subr.mxu0 0.0
    %900 = vmatpush1.msra.mxu0 0.0
    %901 = vmatprep.subr.mxu0 0.0
    %902 = vmatpush1.msra.mxu0 0.0
    %903 = vmatprep.subr.mxu0 0.0
    %904 = vmatpush1.msra.mxu0 0.0
    %905 = vmatprep.subr.mxu0 0.0
    %906 = vmatpush1.msra.mxu0 0.0
    %907 = vmatprep.subr.mxu0 0.0
    %908 = vmatpush1.msra.mxu0 0.0
    %909 = vmatprep.subr.mxu0 0.0
    %910 = vmatpush1.msra.mxu0 0.0
    %911 = vmatprep.subr.mxu0 0.0
    %912 = vmatpush1.msra.mxu0 0.0
    %913 = vmatprep.subr.mxu0 0.0
    %914 = vmatpush1.msra.mxu0 0.0
    %915 = vmatprep.subr.mxu0 0.0
    %916 = vmatpush1.msra.mxu0 0.0
    %917 = vmatprep.subr.mxu0 0.0
    %918 = vmatpush1.msra.mxu0 0.0
    %919 = vmatprep.subr.mxu0 0.0
    %920 = vmatpush1.msra.mxu0 0.0
    %921 = vmatprep.subr.mxu0 0.0
    %922 = vmatpush1.msra.mxu0 0.0
    %923 = vmatprep.subr.mxu0 0.0
    %924 = vmatpush1.msra.mxu0 0.0
    %925 = vmatprep.subr.mxu0 0.0
    %926 = vmatpush1.msra.mxu0 0.0
    %927 = vmatprep.mubr.f32.mxu0 0.0
    %928 = vmatmul.mubr.f32.gmra.mrb[0].mxu0 %v862
    %v929 = vpop.f32.mrb[0].mxu0
    %v930 = vadd.f32 0.0, %v929
    %v931 = vpop.f32.mrb[0].mxu0
    %932 = vdwg.mxu0
    %v933 = vadd.f32 %v776, %v930
    %v934 = vtanh.pop %v933
    %v935 = vmul.f32 %v859, %v772
    %v936 = vsub.f32 1.0, %v859
    %v937 = vmul.f32 %v936, %v934
    %v938 = vadd.f32 %v935, %v937
    %s939 = scalar_lea.vmem [#allocation3], 120
    %v940 = vld [vmem:[%s939] sm:$0xff]
    %v941 = vld [vmem:[%s939 + $0x8] sm:$0xff]
    %v942 = vld [vmem:[%s939 + $0x10] sm:$0xff]
    %943 = vmatprep.subr.mxu0 %v62
    %944 = vmatpush1.msra.mxu0 %v61
    %945 = vmatprep.subr.mxu0 %v64
    %946 = vmatpush1.msra.mxu0 %v63
    %947 = vmatprep.subr.mxu0 %v66
    %948 = vmatpush1.msra.mxu0 %v65
    %949 = vmatprep.subr.mxu0 %v68
    %950 = vmatpush1.msra.mxu0 %v67
    %951 = vmatprep.subr.mxu0 %v70
    %952 = vmatpush1.msra.mxu0 %v69
    %953 = vmatprep.subr.mxu0 %v72
    %954 = vmatpush1.msra.mxu0 %v71
    %955 = vmatprep.subr.mxu0 %v74
    %956 = vmatpush1.msra.mxu0 %v73
    %957 = vmatprep.subr.mxu0 %v76
    %958 = vmatpush1.msra.mxu0 %v75
    %959 = vmatprep.subr.mxu0 %v78
    %960 = vmatpush1.msra.mxu0 %v77
    %961 = vmatprep.subr.mxu0 %v80
    %962 = vmatpush1.msra.mxu0 %v79
    %963 = vmatprep.subr.mxu0 %v82
    %964 = vmatpush1.msra.mxu0 %v81
    %965 = vmatprep.subr.mxu0 %v84
    %966 = vmatpush1.msra.mxu0 %v83
    %967 = vmatprep.subr.mxu0 %v86
    %968 = vmatpush1.msra.mxu0 %v85
    %969 = vmatprep.subr.mxu0 %v88
    %970 = vmatpush1.msra.mxu0 %v87
    %971 = vmatprep.subr.mxu0 %v90
    %972 = vmatpush1.msra.mxu0 %v89
    %973 = vmatprep.subr.mxu0 %v92
    %974 = vmatpush1.msra.mxu0 %v91
    %975 = vmatprep.subr.mxu0 0.0
    %976 = vmatpush1.msra.mxu0 0.0
    %977 = vmatprep.subr.mxu0 0.0
    %978 = vmatpush1.msra.mxu0 0.0
    %979 = vmatprep.subr.mxu0 0.0
    %980 = vmatpush1.msra.mxu0 0.0
    %981 = vmatprep.subr.mxu0 0.0
    %982 = vmatpush1.msra.mxu0 0.0
    %983 = vmatprep.subr.mxu0 0.0
    %984 = vmatpush1.msra.mxu0 0.0
    %985 = vmatprep.subr.mxu0 0.0
    %986 = vmatpush1.msra.mxu0 0.0
    %987 = vmatprep.subr.mxu0 0.0
    %988 = vmatpush1.msra.mxu0 0.0
    %989 = vmatprep.subr.mxu0 0.0
    %990 = vmatpush1.msra.mxu0 0.0
    %991 = vmatprep.subr.mxu0 0.0
    %992 = vmatpush1.msra.mxu0 0.0
    %993 = vmatprep.subr.mxu0 0.0
    %994 = vmatpush1.msra.mxu0 0.0
    %995 = vmatprep.subr.mxu0 0.0
    %996 = vmatpush1.msra.mxu0 0.0
    %997 = vmatprep.subr.mxu0 0.0
    %998 = vmatpush1.msra.mxu0 0.0
    %999 = vmatprep.subr.mxu0 0.0
    %1000 = vmatpush1.msra.mxu0 0.0
    %1001 = vmatprep.subr.mxu0 0.0
    %1002 = vmatpush1.msra.mxu0 0.0
    %1003 = vmatprep.subr.mxu0 0.0
    %1004 = vmatpush1.msra.mxu0 0.0
    %1005 = vmatprep.subr.mxu0 0.0
    %1006 = vmatpush1.msra.mxu0 0.0
    %1007 = vmatprep.mubr.f32.mxu0 0.0
    %1008 = vmatmul.mubr.f32.gmra.mrb[0].mxu0 %v938
    %v1009 = vpop.f32.mrb[0].mxu0
    %v1010 = vadd.f32 0.0, %v1009
    %v1011 = vpop.f32.mrb[0].mxu0
    %v1012 = vadd.f32 0.0, %v1011
    %1013 = vdwg.mxu0
    %v1014 = vadd.f32 %v940, %v1010
    %v1015 = vadd.f32 %v941, %v1012
    %v1016 = vxor.u32 %v1014, 2147483648
    %v1017 = vxor.u32 %v1015, 2147483648
    %v1018 = vmul.f32 %v1016, 1.442695
    %v1019 = vpow.pop %v1018
    %v1020 = vmul.f32 %v1017, 1.442695
    %v1021 = vpow.pop %v1020
    %v1022 = vadd.f32 %v1019, 1.0
    %v1023 = vadd.f32 %v1021, 1.0
    %v1024 = vrcp.pop %v1022
    %v1025 = vmul.f32 1.0, %v1024
    %v1026 = vrcp.pop %v1023
    %v1027 = vmul.f32 1.0, %v1026
    %v1028 = vmul.f32 %v1027, %v938
    %1029 = vmatprep.subr.mxu0 0.0
    %1030 = vmatpush1.msra.mxu0 %v93
    %1031 = vmatprep.subr.mxu0 0.0
    %1032 = vmatpush1.msra.mxu0 %v94
    %1033 = vmatprep.subr.mxu0 0.0
    %1034 = vmatpush1.msra.mxu0 %v95
    %1035 = vmatprep.subr.mxu0 0.0
    %1036 = vmatpush1.msra.mxu0 %v96
    %1037 = vmatprep.subr.mxu0 0.0
    %1038 = vmatpush1.msra.mxu0 %v97
    %1039 = vmatprep.subr.mxu0 0.0
    %1040 = vmatpush1.msra.mxu0 %v98
    %1041 = vmatprep.subr.mxu0 0.0
    %1042 = vmatpush1.msra.mxu0 %v99
    %1043 = vmatprep.subr.mxu0 0.0
    %1044 = vmatpush1.msra.mxu0 %v100
    %1045 = vmatprep.subr.mxu0 0.0
    %1046 = vmatpush1.msra.mxu0 %v101
    %1047 = vmatprep.subr.mxu0 0.0
    %1048 = vmatpush1.msra.mxu0 %v102
    %1049 = vmatprep.subr.mxu0 0.0
    %1050 = vmatpush1.msra.mxu0 %v103
    %1051 = vmatprep.subr.mxu0 0.0
    %1052 = vmatpush1.msra.mxu0 %v104
    %1053 = vmatprep.subr.mxu0 0.0
    %1054 = vmatpush1.msra.mxu0 %v105
    %1055 = vmatprep.subr.mxu0 0.0
    %1056 = vmatpush1.msra.mxu0 %v106
    %1057 = vmatprep.subr.mxu0 0.0
    %1058 = vmatpush1.msra.mxu0 %v107
    %1059 = vmatprep.subr.mxu0 0.0
    %1060 = vmatpush1.msra.mxu0 %v108
    %1061 = vmatprep.subr.mxu0 0.0
    %1062 = vmatpush1.msra.mxu0 0.0
    %1063 = vmatprep.subr.mxu0 0.0
    %1064 = vmatpush1.msra.mxu0 0.0
    %1065 = vmatprep.subr.mxu0 0.0
    %1066 = vmatpush1.msra.mxu0 0.0
    %1067 = vmatprep.subr.mxu0 0.0
    %1068 = vmatpush1.msra.mxu0 0.0
    %1069 = vmatprep.subr.mxu0 0.0
    %1070 = vmatpush1.msra.mxu0 0.0
    %1071 = vmatprep.subr.mxu0 0.0
    %1072 = vmatpush1.msra.mxu0 0.0
    %1073 = vmatprep.subr.mxu0 0.0
    %1074 = vmatpush1.msra.mxu0 0.0
    %1075 = vmatprep.subr.mxu0 0.0
    %1076 = vmatpush1.msra.mxu0 0.0
    %1077 = vmatprep.subr.mxu0 0.0
    %1078 = vmatpush1.msra.mxu0 0.0
    %1079 = vmatprep.subr.mxu0 0.0
    %1080 = vmatpush1.msra.mxu0 0.0
    %1081 = vmatprep.subr.mxu0 0.0
    %1082 = vmatpush1.msra.mxu0 0.0
    %1083 = vmatprep.subr.mxu0 0.0
    %1084 = vmatpush1.msra.mxu0 0.0
    %1085 = vmatprep.subr.mxu0 0.0
    %1086 = vmatpush1.msra.mxu0 0.0
    %1087 = vmatprep.subr.mxu0 0.0
    %1088 = vmatpush1.msra.mxu0 0.0
    %1089 = vmatprep.subr.mxu0 0.0
    %1090 = vmatpush1.msra.mxu0 0.0
    %1091 = vmatprep.subr.mxu0 0.0
    %1092 = vmatpush1.msra.mxu0 0.0
    %1093 = vmatprep.mubr.f32.mxu0 0.0
    %1094 = vmatmul.mubr.f32.gmra.mrb[0].mxu0 %v1028
    %v1095 = vpop.f32.mrb[0].mxu0
    %v1096 = vadd.f32 0.0, %v1095
    %v1097 = vpop.f32.mrb[0].mxu0
    %1098 = vdwg.mxu0
    %v1099 = vadd.f32 %v942, %v1096
    %v1100 = vtanh.pop %v1099
    %v1101 = vmul.f32 %v1025, %v938
    %v1102 = vsub.f32 1.0, %v1025
    %v1103 = vmul.f32 %v1102, %v1100
    %v1104 = vadd.f32 %v1101, %v1103
    %s1105 = scalar_lea.vmem [#allocation3], 144
    %v1106 = vld [vmem:[%s1105] sm:$0xff]
    %v1107 = vld [vmem:[%s1105 + $0x8] sm:$0xff]
    %v1108 = vld [vmem:[%s1105 + $0x10] sm:$0xff]
    %1109 = vmatprep.subr.mxu0 %v62
    %1110 = vmatpush1.msra.mxu0 %v61
    %1111 = vmatprep.subr.mxu0 %v64
    %1112 = vmatpush1.msra.mxu0 %v63
    %1113 = vmatprep.subr.mxu0 %v66
    %1114 = vmatpush1.msra.mxu0 %v65
    %1115 = vmatprep.subr.mxu0 %v68
    %1116 = vmatpush1.msra.mxu0 %v67
    %1117 = vmatprep.subr.mxu0 %v70
    %1118 = vmatpush1.msra.mxu0 %v69
    %1119 = vmatprep.subr.mxu0 %v72
    %1120 = vmatpush1.msra.mxu0 %v71
    %1121 = vmatprep.subr.mxu0 %v74
    %1122 = vmatpush1.msra.mxu0 %v73
    %1123 = vmatprep.subr.mxu0 %v76
    %1124 = vmatpush1.msra.mxu0 %v75
    %1125 = vmatprep.subr.mxu0 %v78
    %1126 = vmatpush1.msra.mxu0 %v77
    %1127 = vmatprep.subr.mxu0 %v80
    %1128 = vmatpush1.msra.mxu0 %v79
    %1129 = vmatprep.subr.mxu0 %v82
    %1130 = vmatpush1.msra.mxu0 %v81
    %1131 = vmatprep.subr.mxu0 %v84
    %1132 = vmatpush1.msra.mxu0 %v83
    %1133 = vmatprep.subr.mxu0 %v86
    %1134 = vmatpush1.msra.mxu0 %v85
    %1135 = vmatprep.subr.mxu0 %v88
    %1136 = vmatpush1.msra.mxu0 %v87
    %1137 = vmatprep.subr.mxu0 %v90
    %1138 = vmatpush1.msra.mxu0 %v89
    %1139 = vmatprep.subr.mxu0 %v92
    %1140 = vmatpush1.msra.mxu0 %v91
    %1141 = vmatprep.subr.mxu0 0.0
    %1142 = vmatpush1.msra.mxu0 0.0
    %1143 = vmatprep.subr.mxu0 0.0
    %1144 = vmatpush1.msra.mxu0 0.0
    %1145 = vmatprep.subr.mxu0 0.0
    %1146 = vmatpush1.msra.mxu0 0.0
    %1147 = vmatprep.subr.mxu0 0.0
    %1148 = vmatpush1.msra.mxu0 0.0
    %1149 = vmatprep.subr.mxu0 0.0
    %1150 = vmatpush1.msra.mxu0 0.0
    %1151 = vmatprep.subr.mxu0 0.0
    %1152 = vmatpush1.msra.mxu0 0.0
    %1153 = vmatprep.subr.mxu0 0.0
    %1154 = vmatpush1.msra.mxu0 0.0
    %1155 = vmatprep.subr.mxu0 0.0
    %1156 = vmatpush1.msra.mxu0 0.0
    %1157 = vmatprep.subr.mxu0 0.0
    %1158 = vmatpush1.msra.mxu0 0.0
    %1159 = vmatprep.subr.mxu0 0.0
    %1160 = vmatpush1.msra.mxu0 0.0
    %1161 = vmatprep.subr.mxu0 0.0
    %1162 = vmatpush1.msra.mxu0 0.0
    %1163 = vmatprep.subr.mxu0 0.0
    %1164 = vmatpush1.msra.mxu0 0.0
    %1165 = vmatprep.subr.mxu0 0.0
    %1166 = vmatpush1.msra.mxu0 0.0
    %1167 = vmatprep.subr.mxu0 0.0
    %1168 = vmatpush1.msra.mxu0 0.0
    %1169 = vmatprep.subr.mxu0 0.0
    %1170 = vmatpush1.msra.mxu0 0.0
    %1171 = vmatprep.subr.mxu0 0.0
    %1172 = vmatpush1.msra.mxu0 0.0
    %1173 = vmatprep.mubr.f32.mxu0 0.0
    %1174 = vmatmul.mubr.f32.gmra.mrb[0].mxu0 %v1104
    %v1175 = vpop.f32.mrb[0].mxu0
    %v1176 = vadd.f32 0.0, %v1175
    %v1177 = vpop.f32.mrb[0].mxu0
    %v1178 = vadd.f32 0.0, %v1177
    %1179 = vdwg.mxu0
    %v1180 = vadd.f32 %v1106, %v1176
    %v1181 = vadd.f32 %v1107, %v1178
    %v1182 = vxor.u32 %v1180, 2147483648
    %v1183 = vxor.u32 %v1181, 2147483648
    %v1184 = vmul.f32 %v1182, 1.442695
    %v1185 = vpow.pop %v1184
    %v1186 = vmul.f32 %v1183, 1.442695
    %v1187 = vpow.pop %v1186
    %v1188 = vadd.f32 %v1185, 1.0
    %v1189 = vadd.f32 %v1187, 1.0
    %v1190 = vrcp.pop %v1188
    %v1191 = vmul.f32 1.0, %v1190
    %v1192 = vrcp.pop %v1189
    %v1193 = vmul.f32 1.0, %v1192
    %v1194 = vmul.f32 %v1193, %v1104
    %1195 = vmatprep.subr.mxu0 0.0
    %1196 = vmatpush1.msra.mxu0 %v93
    %1197 = vmatprep.subr.mxu0 0.0
    %1198 = vmatpush1.msra.mxu0 %v94
    %1199 = vmatprep.subr.mxu0 0.0
    %1200 = vmatpush1.msra.mxu0 %v95
    %1201 = vmatprep.subr.mxu0 0.0
    %1202 = vmatpush1.msra.mxu0 %v96
    %1203 = vmatprep.subr.mxu0 0.0
    %1204 = vmatpush1.msra.mxu0 %v97
    %1205 = vmatprep.subr.mxu0 0.0
    %1206 = vmatpush1.msra.mxu0 %v98
    %1207 = vmatprep.subr.mxu0 0.0
    %1208 = vmatpush1.msra.mxu0 %v99
    %1209 = vmatprep.subr.mxu0 0.0
    %1210 = vmatpush1.msra.mxu0 %v100
    %1211 = vmatprep.subr.mxu0 0.0
    %1212 = vmatpush1.msra.mxu0 %v101
    %1213 = vmatprep.subr.mxu0 0.0
    %1214 = vmatpush1.msra.mxu0 %v102
    %1215 = vmatprep.subr.mxu0 0.0
    %1216 = vmatpush1.msra.mxu0 %v103
    %1217 = vmatprep.subr.mxu0 0.0
    %1218 = vmatpush1.msra.mxu0 %v104
    %1219 = vmatprep.subr.mxu0 0.0
    %1220 = vmatpush1.msra.mxu0 %v105
    %1221 = vmatprep.subr.mxu0 0.0
    %1222 = vmatpush1.msra.mxu0 %v106
    %1223 = vmatprep.subr.mxu0 0.0
    %1224 = vmatpush1.msra.mxu0 %v107
    %1225 = vmatprep.subr.mxu0 0.0
    %1226 = vmatpush1.msra.mxu0 %v108
    %1227 = vmatprep.subr.mxu0 0.0
    %1228 = vmatpush1.msra.mxu0 0.0
    %1229 = vmatprep.subr.mxu0 0.0
    %1230 = vmatpush1.msra.mxu0 0.0
    %1231 = vmatprep.subr.mxu0 0.0
    %1232 = vmatpush1.msra.mxu0 0.0
    %1233 = vmatprep.subr.mxu0 0.0
    %1234 = vmatpush1.msra.mxu0 0.0
    %1235 = vmatprep.subr.mxu0 0.0
    %1236 = vmatpush1.msra.mxu0 0.0
    %1237 = vmatprep.subr.mxu0 0.0
    %1238 = vmatpush1.msra.mxu0 0.0
    %1239 = vmatprep.subr.mxu0 0.0
    %1240 = vmatpush1.msra.mxu0 0.0
    %1241 = vmatprep.subr.mxu0 0.0
    %1242 = vmatpush1.msra.mxu0 0.0
    %1243 = vmatprep.subr.mxu0 0.0
    %1244 = vmatpush1.msra.mxu0 0.0
    %1245 = vmatprep.subr.mxu0 0.0
    %1246 = vmatpush1.msra.mxu0 0.0
    %1247 = vmatprep.subr.mxu0 0.0
    %1248 = vmatpush1.msra.mxu0 0.0
    %1249 = vmatprep.subr.mxu0 0.0
    %1250 = vmatpush1.msra.mxu0 0.0
    %1251 = vmatprep.subr.mxu0 0.0
    %1252 = vmatpush1.msra.mxu0 0.0
    %1253 = vmatprep.subr.mxu0 0.0
    %1254 = vmatpush1.msra.mxu0 0.0
    %1255 = vmatprep.subr.mxu0 0.0
    %1256 = vmatpush1.msra.mxu0 0.0
    %1257 = vmatprep.subr.mxu0 0.0
    %1258 = vmatpush1.msra.mxu0 0.0
    %1259 = vmatprep.mubr.f32.mxu0 0.0
    %1260 = vmatmul.mubr.f32.gmra.mrb[0].mxu0 %v1194
    %v1261 = vpop.f32.mrb[0].mxu0
    %v1262 = vadd.f32 0.0, %v1261
    %v1263 = vpop.f32.mrb[0].mxu0
    %1264 = vdwg.mxu0
    %v1265 = vadd.f32 %v1108, %v1262
    %v1266 = vtanh.pop %v1265
    %v1267 = vmul.f32 %v1191, %v1104
    %v1268 = vsub.f32 1.0, %v1191
    %v1269 = vmul.f32 %v1268, %v1266
    %v1270 = vadd.f32 %v1267, %v1269
    %s1271 = scalar_lea.vmem [#allocation3], 168
    %v1272 = vld [vmem:[%s1271] sm:$0xff]
    %v1273 = vld [vmem:[%s1271 + $0x8] sm:$0xff]
    %v1274 = vld [vmem:[%s1271 + $0x10] sm:$0xff]
    %1275 = vmatprep.subr.mxu0 %v62
    %1276 = vmatpush1.msra.mxu0 %v61
    %1277 = vmatprep.subr.mxu0 %v64
    %1278 = vmatpush1.msra.mxu0 %v63
    %1279 = vmatprep.subr.mxu0 %v66
    %1280 = vmatpush1.msra.mxu0 %v65
    %1281 = vmatprep.subr.mxu0 %v68
    %1282 = vmatpush1.msra.mxu0 %v67
    %1283 = vmatprep.subr.mxu0 %v70
    %1284 = vmatpush1.msra.mxu0 %v69
    %1285 = vmatprep.subr.mxu0 %v72
    %1286 = vmatpush1.msra.mxu0 %v71
    %1287 = vmatprep.subr.mxu0 %v74
    %1288 = vmatpush1.msra.mxu0 %v73
    %1289 = vmatprep.subr.mxu0 %v76
    %1290 = vmatpush1.msra.mxu0 %v75
    %1291 = vmatprep.subr.mxu0 %v78
    %1292 = vmatpush1.msra.mxu0 %v77
    %1293 = vmatprep.subr.mxu0 %v80
    %1294 = vmatpush1.msra.mxu0 %v79
    %1295 = vmatprep.subr.mxu0 %v82
    %1296 = vmatpush1.msra.mxu0 %v81
    %1297 = vmatprep.subr.mxu0 %v84
    %1298 = vmatpush1.msra.mxu0 %v83
    %1299 = vmatprep.subr.mxu0 %v86
    %1300 = vmatpush1.msra.mxu0 %v85
    %1301 = vmatprep.subr.mxu0 %v88
    %1302 = vmatpush1.msra.mxu0 %v87
    %1303 = vmatprep.subr.mxu0 %v90
    %1304 = vmatpush1.msra.mxu0 %v89
    %1305 = vmatprep.subr.mxu0 %v92
    %1306 = vmatpush1.msra.mxu0 %v91
    %1307 = vmatprep.subr.mxu0 0.0
    %1308 = vmatpush1.msra.mxu0 0.0
    %1309 = vmatprep.subr.mxu0 0.0
    %1310 = vmatpush1.msra.mxu0 0.0
    %1311 = vmatprep.subr.mxu0 0.0
    %1312 = vmatpush1.msra.mxu0 0.0
    %1313 = vmatprep.subr.mxu0 0.0
    %1314 = vmatpush1.msra.mxu0 0.0
    %1315 = vmatprep.subr.mxu0 0.0
    %1316 = vmatpush1.msra.mxu0 0.0
    %1317 = vmatprep.subr.mxu0 0.0
    %1318 = vmatpush1.msra.mxu0 0.0
    %1319 = vmatprep.subr.mxu0 0.0
    %1320 = vmatpush1.msra.mxu0 0.0
    %1321 = vmatprep.subr.mxu0 0.0
    %1322 = vmatpush1.msra.mxu0 0.0
    %1323 = vmatprep.subr.mxu0 0.0
    %1324 = vmatpush1.msra.mxu0 0.0
    %1325 = vmatprep.subr.mxu0 0.0
    %1326 = vmatpush1.msra.mxu0 0.0
    %1327 = vmatprep.subr.mxu0 0.0
    %1328 = vmatpush1.msra.mxu0 0.0
    %1329 = vmatprep.subr.mxu0 0.0
    %1330 = vmatpush1.msra.mxu0 0.0
    %1331 = vmatprep.subr.mxu0 0.0
    %1332 = vmatpush1.msra.mxu0 0.0
    %1333 = vmatprep.subr.mxu0 0.0
    %1334 = vmatpush1.msra.mxu0 0.0
    %1335 = vmatprep.subr.mxu0 0.0
    %1336 = vmatpush1.msra.mxu0 0.0
    %1337 = vmatprep.subr.mxu0 0.0
    %1338 = vmatpush1.msra.mxu0 0.0
    %1339 = vmatprep.mubr.f32.mxu0 0.0
    %1340 = vmatmul.mubr.f32.gmra.mrb[0].mxu0 %v1270
    %v1341 = vpop.f32.mrb[0].mxu0
    %v1342 = vadd.f32 0.0, %v1341
    %v1343 = vpop.f32.mrb[0].mxu0
    %v1344 = vadd.f32 0.0, %v1343
    %1345 = vdwg.mxu0
    %v1346 = vadd.f32 %v1272, %v1342
    %v1347 = vadd.f32 %v1273, %v1344
    %v1348 = vxor.u32 %v1346, 2147483648
    %v1349 = vxor.u32 %v1347, 2147483648
    %v1350 = vmul.f32 %v1348, 1.442695
    %v1351 = vpow.pop %v1350
    %v1352 = vmul.f32 %v1349, 1.442695
    %v1353 = vpow.pop %v1352
    %v1354 = vadd.f32 %v1351, 1.0
    %v1355 = vadd.f32 %v1353, 1.0
    %v1356 = vrcp.pop %v1354
    %v1357 = vmul.f32 1.0, %v1356
    %v1358 = vrcp.pop %v1355
    %v1359 = vmul.f32 1.0, %v1358
    %v1360 = vmul.f32 %v1359, %v1270
    %1361 = vmatprep.subr.mxu0 0.0
    %1362 = vmatpush1.msra.mxu0 %v93
    %1363 = vmatprep.subr.mxu0 0.0
    %1364 = vmatpush1.msra.mxu0 %v94
    %1365 = vmatprep.subr.mxu0 0.0
    %1366 = vmatpush1.msra.mxu0 %v95
    %1367 = vmatprep.subr.mxu0 0.0
    %1368 = vmatpush1.msra.mxu0 %v96
    %1369 = vmatprep.subr.mxu0 0.0
    %1370 = vmatpush1.msra.mxu0 %v97
    %1371 = vmatprep.subr.mxu0 0.0
    %1372 = vmatpush1.msra.mxu0 %v98
    %1373 = vmatprep.subr.mxu0 0.0
    %1374 = vmatpush1.msra.mxu0 %v99
    %1375 = vmatprep.subr.mxu0 0.0
    %1376 = vmatpush1.msra.mxu0 %v100
    %1377 = vmatprep.subr.mxu0 0.0
    %1378 = vmatpush1.msra.mxu0 %v101
    %1379 = vmatprep.subr.mxu0 0.0
    %1380 = vmatpush1.msra.mxu0 %v102
    %1381 = vmatprep.subr.mxu0 0.0
    %1382 = vmatpush1.msra.mxu0 %v103
    %1383 = vmatprep.subr.mxu0 0.0
    %1384 = vmatpush1.msra.mxu0 %v104
    %1385 = vmatprep.subr.mxu0 0.0
    %1386 = vmatpush1.msra.mxu0 %v105
    %1387 = vmatprep.subr.mxu0 0.0
    %1388 = vmatpush1.msra.mxu0 %v106
    %1389 = vmatprep.subr.mxu0 0.0
    %1390 = vmatpush1.msra.mxu0 %v107
    %1391 = vmatprep.subr.mxu0 0.0
    %1392 = vmatpush1.msra.mxu0 %v108
    %1393 = vmatprep.subr.mxu0 0.0
    %1394 = vmatpush1.msra.mxu0 0.0
    %1395 = vmatprep.subr.mxu0 0.0
    %1396 = vmatpush1.msra.mxu0 0.0
    %1397 = vmatprep.subr.mxu0 0.0
    %1398 = vmatpush1.msra.mxu0 0.0
    %1399 = vmatprep.subr.mxu0 0.0
    %1400 = vmatpush1.msra.mxu0 0.0
    %1401 = vmatprep.subr.mxu0 0.0
    %1402 = vmatpush1.msra.mxu0 0.0
    %1403 = vmatprep.subr.mxu0 0.0
    %1404 = vmatpush1.msra.mxu0 0.0
    %1405 = vmatprep.subr.mxu0 0.0
    %1406 = vmatpush1.msra.mxu0 0.0
    %1407 = vmatprep.subr.mxu0 0.0
    %1408 = vmatpush1.msra.mxu0 0.0
    %1409 = vmatprep.subr.mxu0 0.0
    %1410 = vmatpush1.msra.mxu0 0.0
    %1411 = vmatprep.subr.mxu0 0.0
    %1412 = vmatpush1.msra.mxu0 0.0
    %1413 = vmatprep.subr.mxu0 0.0
    %1414 = vmatpush1.msra.mxu0 0.0
    %1415 = vmatprep.subr.mxu0 0.0
    %1416 = vmatpush1.msra.mxu0 0.0
    %1417 = vmatprep.subr.mxu0 0.0
    %1418 = vmatpush1.msra.mxu0 0.0
    %1419 = vmatprep.subr.mxu0 0.0
    %1420 = vmatpush1.msra.mxu0 0.0
    %1421 = vmatprep.subr.mxu0 0.0
    %1422 = vmatpush1.msra.mxu0 0.0
    %1423 = vmatprep.subr.mxu0 0.0
    %1424 = vmatpush1.msra.mxu0 0.0
    %1425 = vmatprep.mubr.f32.mxu0 0.0
    %1426 = vmatmul.mubr.f32.gmra.mrb[0].mxu0 %v1360
    %v1427 = vpop.f32.mrb[0].mxu0
    %v1428 = vadd.f32 0.0, %v1427
    %v1429 = vpop.f32.mrb[0].mxu0
    %1430 = vdwg.mxu0
    %v1431 = vadd.f32 %v1274, %v1428
    %v1432 = vtanh.pop %v1431
    %v1433 = vmul.f32 %v1357, %v1270
    %v1434 = vsub.f32 1.0, %v1357
    %v1435 = vmul.f32 %v1434, %v1432
    %v1436 = vadd.f32 %v1433, %v1435
    %1437 = vst [vmem:[#allocation2] sm:$0xff] %v1436
    // Predicated region
    $region30: #{tpu_custom_call.1} parent=1 // pred_check
      %p1438 = pneg %p56
    $region31: #{tpu_custom_call.1} parent=1 // pred_check_branch
      %1440 = sbr.rel (%p1438) target = $region33
    $region32: #{tpu_custom_call.1} parent=1 // pred_region
      %1441 = vst [vmem:[#allocation9] sm:$0xff] %v1436
    $region33: #{tpu_custom_call.1} parent=1 // pred_fallthru
      _
    // Predicated region
    $region34: #{tpu_custom_call.1} parent=1 // pred_check
      _
    $region35: #{tpu_custom_call.1} parent=1 // pred_check_branch
      %1443 = sbr.rel (0) target = $region37
    $region36: #{tpu_custom_call.1} parent=1 // pred_region
      %s1445 = ssub.s32 128, 128
      %1446 = vsyncadd [#allocation5], %s1445
      %s1448 = sshll.u32 [#allocation9], 4
      %s1449 = int_to_ptr.vmem [resolvable:$true] %s1448
      %1451 = dma.vmem_to_hbm [thread:$0]  %s1449, 128, %s3, [#allocation5]
    $region37: #{tpu_custom_call.1} parent=1 // pred_fallthru
      _
    // Predicated region
    $region38: #{tpu_custom_call.1} parent=1 // pred_check
      _
    $region39: #{tpu_custom_call.1} parent=1 // pred_check_branch
      %1453 = sbr.rel (0) target = $region41
    $region40: #{tpu_custom_call.1} parent=1 // pred_region
      %1454 = dma.done [#allocation5], 128
    $region41: #{tpu_custom_call.1} parent=1 // pred_fallthru
      _
    %1455 = vsyncpa [#allocation4], 1
    %1456 = vsyncpa [#allocation7], 1
    %1457 = vsyncpa [#allocation5], 1

</llo_original>
